<compile_context>
chip_gen: v5e
topology: v5e:2x2
jax: 0.10.0
libtpu: 0.0.40
codegen_flags: <defaults>
</compile_context>

<pallas_src>
import math

import jax
import jax.numpy as jnp
import numpy as np
from jax.experimental import pallas as pl
from jax.experimental.pallas import tpu as pltpu

# -----------------------------------------------------------------------------
# Small config consistent with FEBw's forward: (b, t, h, d) with h*d == d_model
# -----------------------------------------------------------------------------
B_SZ = 2      # batch
T_SEQ = 32    # sequence length (power of two)
HEADS = 4     # h
HEAD_D = 8    # d
D_MODEL = HEADS * HEAD_D      # 32
K_WAV = 4     # k (multiwavelet order)
C_CH = 8      # c (channels)
MODES = 8     # num_modes (alpha)
L_DEC = 1     # decomposition levels (exercises the full MWT path)
CK = C_CH * K_WAV             # 32


# -----------------------------------------------------------------------------
# Fused Pallas kernel
# -----------------------------------------------------------------------------
def _febw_fused_kernel(x_ref, w1_ref, b1_ref, fz_ref, wc_ref, bz_ref,
                       w5_ref, b5_ref, o_ref):
    """Whole FEBw forward on (B*T/2, 2*d_model) "time-pair" rows, all in VMEM.

    x : (BNh, 2dm)        rows = (batch, t//2), cols = (parity, d_model)
    w1: (2dm, 4ck)        lin_in folded with [decompose | T_0-placement]
    fz: (2*B*l, B*Nh)     stacked truncated rfft matrix [Re; Im]
    wc: (l, 2ck, 4ck)     per-mode complex mixing weight [wt_r | wt_i]
    bz: (B*Nh, 2*B*l)     stacked truncated irfft matrix [Re | Im]
    w5: (2ck, 2dm)        wavelet reconstruct folded with lin_out
    o : (BNh, 2dm)        (Nh = T//2, dm = d_model, ck = c*k)
    """
    f32 = jnp.float32
    two_ck = w5_ref.shape[0]          # 2*c*k
    bl = fz_ref.shape[0] // 2         # B * l
    nb = bl // wc_ref.shape[0]        # batch replication factor for wc

    # Stage 1: lin_in ∘ (wavelet decompose | T_0 placement) -- one 128-lane matmul.
    h1 = jnp.dot(x_ref[...], w1_ref[...], preferred_element_type=f32) + b1_ref[...]
    ds = h1[:, :two_ck]               # cols [d | s], each (c, k)
    t0 = h1[:, two_ck:]               # T_0(s)+b placed in the (c, half=0, k) slots

    # Stage 2: stacked truncated rfft along the decimated time axis (one matmul).
    xf = jnp.dot(fz_ref[...], ds, preferred_element_type=f32)        # (2*B*l, 2ck)
    xr = xf[:bl]                                                     # real rows
    xi = xf[bl:]                                                     # imag rows

    # Stage 3: per-mode complex channel mixing, 128-lane dense.
    # wc = [wt_r | wt_i]; replicate over batch inside VMEM (no HBM broadcast).
    wc = wc_ref[...]
    wcr = jnp.concatenate([wc] * nb, axis=0)                         # (B*l, 2ck, 4ck)
    t1 = jnp.sum(xr[:, :, None] * wcr, axis=1)                       # [xr@wr | xr@wi]
    t2 = jnp.sum(xi[:, :, None] * wcr, axis=1)                       # [xi@wr | xi@wi]
    o_re = t1[:, :two_ck] - t2[:, two_ck:]                           # (B*l, 2ck)
    o_im = t1[:, two_ck:] + t2[:, :two_ck]                           # (B*l, 2ck)

    # Stage 4: stacked truncated irfft (one matmul) + resident T_0(s) path.
    o_stack = jnp.concatenate([o_re, o_im], axis=0)                  # (2*B*l, 2ck)
    rec = jnp.dot(bz_ref[...], o_stack, preferred_element_type=f32) + t0

    # Stage 5: wavelet reconstruct ∘ lin_out -- one matmul.
    out = jnp.dot(rec, w5_ref[...], preferred_element_type=f32) + b5_ref[...]
    o_ref[...] = out.astype(o_ref.dtype)


_VMEM = pl.BlockSpec(memory_space=pltpu.MemorySpace.VMEM)


def _febw_forward(x, fw):
    """(b, t, h, d) -> (b, t, h, d). Equivalent to FEBw.forward (L=1)."""
    b, t, h, d = x.shape
    dm = h * d
    rows = b * (t // 2)
    # rows = (batch, time-pair), cols = (parity, d_model): a free reshape.
    x_pairs = x.reshape(rows, 2 * dm)

    # Advisory cost estimate (kernel is tiny and launch/DMA bound).
    two_ck = fw['w5'].shape[0]
    four_ck = fw['wc'].shape[2]
    bl = fw['fz'].shape[0] // 2
    bnh = fw['fz'].shape[1]
    flops = (2 * rows * (2 * dm) * fw['w1'].shape[1]        # stage 1
             + 2 * (2 * bl) * bnh * two_ck                  # stage 2
             + 4 * bl * two_ck * four_ck                    # stage 3 (mul+add)
             + 2 * bnh * (2 * bl) * two_ck                  # stage 4
             + 2 * rows * two_ck * (2 * dm))                # stage 5
    bytes_accessed = (x_pairs.size + rows * 2 * dm
                      + sum(int(np.prod(v.shape)) for v in fw.values())) * 4

    out_pairs = pl.pallas_call(
        _febw_fused_kernel,
        out_shape=jax.ShapeDtypeStruct((rows, 2 * dm), jnp.float32),
        in_specs=[_VMEM] * 8,
        out_specs=_VMEM,
        cost_estimate=pl.CostEstimate(flops=flops, transcendentals=0,
                                      bytes_accessed=bytes_accessed),
    )(x_pairs, fw['w1'], fw['b1'], fw['fz'], fw['wc'], fw['bz'],
      fw['w5'], fw['b5'])
    # cols [out_even | out_odd] re-interleave into the time axis: free reshape.
    return out_pairs.reshape(b, t, h, d)


febw_forward = jax.jit(_febw_forward)


# -----------------------------------------------------------------------------
# Host-side (float64, once) folding of module parameters into fused weights
# -----------------------------------------------------------------------------
def build_fused_weights(p, B, T, C, K, modes):
    assert L_DEC == 1, "fused kernel is specialized to one decomposition level"
    assert T > 0 and (T & (T - 1)) == 0, "T must be a power of two (pad() no-op)"
    CKl = C * K
    Nh = T // 2
    l = min(modes, Nh // 2 + 1)

    f64 = lambda a: np.asarray(a, np.float64)
    w_in, b_in = f64(p['w_in']), f64(p['b_in'])
    w_out, b_out = f64(p['w_out']), f64(p['b_out'])
    w_t0, b_t0 = f64(p['w_t0']), f64(p['b_t0'])
    ec_d, ec_s = f64(p['ec_d']), f64(p['ec_s'])
    rc_e, rc_o = f64(p['rc_e']), f64(p['rc_o'])

    I_c, I_2, I_b = np.eye(C), np.eye(2), np.eye(B)

    # lin_in / lin_out on (even|odd) time-pair rows: block-diag over parity.
    w_in_big = np.kron(I_2, w_in)                         # (2dm, 2ck)
    b_in_big = np.tile(b_in, 2)[None, :]                  # (1, 2ck)
    w_out_big = np.kron(I_2, w_out)                       # (2ck, 2dm)
    b_out_big = np.tile(b_out, 2)[None, :]                # (1, 2dm)

    # decompose filters: rows (parity, c, k) -> cols [d | s] (c, k).
    ecd_big = np.concatenate([np.kron(I_c, ec_d[:K]), np.kron(I_c, ec_d[K:])], axis=0)
    ecs_big = np.concatenate([np.kron(I_c, ec_s[:K]), np.kron(I_c, ec_s[K:])], axis=0)
    w_dec = np.concatenate([ecd_big, ecs_big], axis=1)    # (2ck, 2ck)

    # T_0 applied to s, placed into the half=0 slots of the (c, half, k) layout,
    # pre-composed with ec_s.
    w_t0_place = np.kron(I_c, np.concatenate([w_t0, np.zeros((K, K))], axis=1))
    w_t0p = ecs_big @ w_t0_place                          # (2ck, 2ck)
    b_t0p = np.tile(np.concatenate([b_t0, np.zeros(K)]), C)[None, :]   # (1, 2ck)

    # Opt 1: fold lin_in into decompose and T_0 branches -> one (2dm, 4ck) matmul.
    w1 = np.concatenate([w_in_big @ w_dec, w_in_big @ w_t0p], axis=1)       # (2dm, 4ck)
    b1 = np.concatenate([b_in_big @ w_dec, b_in_big @ w_t0p + b_t0p], axis=1)  # (1, 4ck)

    # reconstruct filters: rows (c, half, k) -> cols [x_even | x_odd] (c, k).
    w_rec = np.concatenate([np.kron(I_c, rc_e), np.kron(I_c, rc_o)], axis=1)
    # Opt 2: fold reconstruct into lin_out -> one (2ck, 2dm) matmul.
    w5 = w_rec @ w_out_big                                # (2ck, 2dm)
    b5 = b_out_big                                        # (1, 2dm)

    # Truncated real-DFT (rfft) / inverse (irfft) matrices along the decimated
    # time axis, block-diagonal over the batch, stacked re/im (opt 3).
    # TODO(synk): at realistic batch sizes replace kron(I_B, .) with a batch grid
    #             axis so DFT FLOPs/memory do not grow O(B^2).
    n = np.arange(Nh, dtype=np.float64)
    f = np.arange(l, dtype=np.float64)
    ang = 2.0 * np.pi * np.outer(f, n) / Nh               # (l, Nh)
    fr, fi = np.cos(ang), -np.sin(ang)
    wgt = np.where((f == 0) | ((Nh % 2 == 0) & (f == Nh // 2)), 1.0, 2.0)
    angb = 2.0 * np.pi * np.outer(n, f) / Nh              # (Nh, l)
    br = np.cos(angb) * wgt[None, :] / Nh
    bi = -np.sin(angb) * wgt[None, :] / Nh
    fz = np.concatenate([np.kron(I_b, fr), np.kron(I_b, fi)], axis=0)   # (2Bl, BNh)
    bz = np.concatenate([np.kron(I_b, br), np.kron(I_b, bi)], axis=1)   # (BNh, 2Bl)

    # Per-mode complex channel mixing: A (d->Ud), B (s->Ud), C (d->Us) fused into
    # one (2ck -> 2ck) block weight per mode; output columns laid out (c, half, k)
    # with half=0 the Us ("x") slots and half=1 the Ud slots.  Real and imaginary
    # parts are packed side-by-side into a single 128-lane-dense weight (opt 4);
    # NO batch replication on the host (opt 5).
    def per_mode(w):                                      # (ck, ck, modes) -> (l, ck, C, K)
        return np.transpose(f64(w)[:, :, :l], (2, 0, 1)).reshape(l, CKl, C, K)

    wt_r = np.zeros((l, 2 * CKl, C, 2, K))
    wt_i = np.zeros((l, 2 * CKl, C, 2, K))
    wt_r[:, :CKl, :, 1, :] = per_mode(p['A_wr']); wt_i[:, :CKl, :, 1, :] = per_mode(p['A_wi'])
    wt_r[:, CKl:, :, 1, :] = per_mode(p['B_wr']); wt_i[:, CKl:, :, 1, :] = per_mode(p['B_wi'])
    wt_r[:, :CKl, :, 0, :] = per_mode(p['C_wr']); wt_i[:, :CKl, :, 0, :] = per_mode(p['C_wi'])
    wt_r = wt_r.reshape(l, 2 * CKl, 2 * CKl)
    wt_i = wt_i.reshape(l, 2 * CKl, 2 * CKl)
    wc = np.concatenate([wt_r, wt_i], axis=-1)            # (l, 2ck, 4ck)

    j32 = lambda a: jnp.asarray(a, jnp.float32)
    return dict(w1=j32(w1), b1=j32(b1), fz=j32(fz), wc=j32(wc), bz=j32(bz),
                w5=j32(w5), b5=j32(b5))


# -----------------------------------------------------------------------------
# Deterministic parameter init (shapes from the module's __init__)
# -----------------------------------------------------------------------------
def init_params(key):
    ks = jax.random.split(key, 13)

    def lin(ki, kb, fan_in, fan_out):
        bound = 1.0 / np.sqrt(fan_in)
        w = jax.random.uniform(ki, (fan_in, fan_out), jnp.float32, -bound, bound)
        b = jax.random.uniform(kb, (fan_out,), jnp.float32, -bound, bound)
        return w, b

    w_in, b_in = lin(ks[0], ks[1], D_MODEL, CK)
    w_out, b_out = lin(ks[2], ks[3], CK, D_MODEL)
    w_t0, b_t0 = lin(ks[4], ks[5], K_WAV, K_WAV)

    scale = 1.0 / (CK * CK)                       # 1 / (c*k*c*k)

    def ft_w(kk):
        k1, k2 = jax.random.split(kk)
        wr = scale * jax.random.uniform(k1, (CK, CK, MODES), jnp.float32)
        wi = scale * jax.random.uniform(k2, (CK, CK, MODES), jnp.float32)
        return wr, wi

    A_wr, A_wi = ft_w(ks[6])
    B_wr, B_wi = ft_w(ks[7])
    C_wr, C_wi = ft_w(ks[8])

    # TODO(synk): exact Legendre multiwavelet filters (sympy-based get_filter)
    # not reproduced; deterministic surrogate (2k, k) filter banks of identical shape.
    def filt(kk):
        return jax.random.uniform(kk, (2 * K_WAV, K_WAV), jnp.float32, -0.5, 0.5)

    ec_s, ec_d, rc_e, rc_o = filt(ks[9]), filt(ks[10]), filt(ks[11]), filt(ks[12])

    return dict(w_in=w_in, b_in=b_in, w_out=w_out, b_out=b_out,
                w_t0=w_t0, b_t0=b_t0,
                A_wr=A_wr, A_wi=A_wi, B_wr=B_wr, B_wi=B_wi, C_wr=C_wr, C_wi=C_wi,
                ec_s=ec_s, ec_d=ec_d, rc_e=rc_e, rc_o=rc_o)


# -----------------------------------------------------------------------------
# Pure numpy reference (float64) mirroring the PyTorch forward exactly
# -----------------------------------------------------------------------------
def _np_sparse_ft(x, wr, wi, modes):
    B, N, c, k = x.shape
    ck = c * k
    xp = x.reshape(B, N, ck).transpose(0, 2, 1)                # (B, ck, N)
    xf = np.fft.rfft(xp, axis=-1)
    l = min(modes, N // 2 + 1)
    W = wr[:, :, :l] + 1j * wi[:, :, :l]
    outf = np.zeros((B, ck, N // 2 + 1), dtype=np.complex128)
    outf[:, :, :l] = np.einsum('bix,iox->box', xf[:, :, :l], W)
    y = np.fft.irfft(outf, n=N, axis=-1)
    return y.transpose(0, 2, 1).reshape(B, N, c, k)


def febw_reference(x, p):
    P = {k: np.asarray(v, np.float64) for k, v in p.items()}
    b, t, h, d = x.shape
    xn = np.asarray(x, np.float64).reshape(b, t, h * d)
    y = (xn @ P['w_in'] + P['b_in']).reshape(b, t, C_CH, K_WAV)
    N0 = y.shape[1]
    nl = 2 ** int(math.ceil(math.log2(N0)))
    if N0 != nl:
        y = np.concatenate([y, y[:, :nl - N0]], axis=1)
    Ud, Us = [], []
    for _ in range(L_DEC):
        xa = np.concatenate([y[:, ::2], y[:, 1::2]], axis=-1)
        dc = xa @ P['ec_d']
        sc = xa @ P['ec_s']
        Ud.append(_np_sparse_ft(dc, P['A_wr'], P['A_wi'], MODES)
                  + _np_sparse_ft(sc, P['B_wr'], P['B_wi'], MODES))
        Us.append(_np_sparse_ft(dc, P['C_wr'], P['C_wi'], MODES))
        y = sc
    y = y @ P['w_t0'] + P['b_t0']
    for i in range(L_DEC - 1, -1, -1):
        y = y + Us[i]
        y = np.concatenate([y, Ud[i]], axis=-1)
        xe = y @ P['rc_e']
        xo = y @ P['rc_o']
        Bq, Nq, cq, kq = xe.shape
        out = np.zeros((Bq, 2 * Nq, cq, kq))
        out[:, ::2] = xe
        out[:, 1::2] = xo
        y = out
    y = y[:, :N0]
    o = y.reshape(b, t, CK) @ P['w_out'] + P['b_out']
    return o.reshape(b, t, h, d)


# -----------------------------------------------------------------------------
if __name__ == "__main__":
    key = jax.random.PRNGKey(0)
    kx, kp = jax.random.split(key)
    x = jax.random.normal(kx, (B_SZ, T_SEQ, HEADS, HEAD_D), dtype=jnp.float32)
    params = init_params(kp)
    fused = build_fused_weights(params, B_SZ, T_SEQ, C_CH, K_WAV, MODES)

    out = jax.block_until_ready(febw_forward(x, fused))
    assert out.shape == (B_SZ, T_SEQ, HEADS, HEAD_D)

    ref = febw_reference(x, params)
    err = float(np.max(np.abs(np.asarray(out, np.float64) - ref)))
    tol = 5e-3 * max(1.0, float(np.max(np.abs(ref))))
    assert np.isfinite(err) and err < tol, f"max abs err {err} (tol {tol})"

    print("KERNEL_OK")
</pallas_src>

<mosaic_0001>
module attributes {stable_mosaic.version = 11 : i64} {
  func.func @_febw_fused_kernel(%arg0: memref<32x64xf32, #tpu.memory_space<vmem>>, %arg1: memref<64x128xf32, #tpu.memory_space<vmem>>, %arg2: memref<1x128xf32, #tpu.memory_space<vmem>>, %arg3: memref<32x32xf32, #tpu.memory_space<vmem>>, %arg4: memref<8x64x128xf32, #tpu.memory_space<vmem>>, %arg5: memref<32x32xf32, #tpu.memory_space<vmem>>, %arg6: memref<64x64xf32, #tpu.memory_space<vmem>>, %arg7: memref<1x64xf32, #tpu.memory_space<vmem>>, %arg8: memref<32x64xf32, #tpu.memory_space<vmem>>) attributes {dimension_semantics = [], scalar_prefetch = 0 : i64, scratch_operands = 0 : i64, tpu.core_type = #tpu.core_type<tc>} {
    %c0 = arith.constant 0 : index
    %c0_0 = arith.constant 0 : index
    %0 = vector.load %arg0[%c0, %c0_0] : memref<32x64xf32, #tpu.memory_space<vmem>>, vector<32x64xf32>
    %c0_1 = arith.constant 0 : index
    %c0_2 = arith.constant 0 : index
    %1 = vector.load %arg1[%c0_1, %c0_2] : memref<64x128xf32, #tpu.memory_space<vmem>>, vector<64x128xf32>
    %cst = arith.constant dense<0.000000e+00> : vector<32x128xf32>
    %2 = tpu.matmul %0, %1, %cst {dimension_numbers = #tpu.dot_dimension_numbers<[1], [0], [0], [1], [0, 0, 1, 1], [], []>} : vector<32x64xf32>, vector<64x128xf32>, vector<32x128xf32> -> vector<32x128xf32>
    %c0_3 = arith.constant 0 : index
    %c0_4 = arith.constant 0 : index
    %3 = vector.load %arg2[%c0_3, %c0_4] : memref<1x128xf32, #tpu.memory_space<vmem>>, vector<1x128xf32>
    %4 = vector.broadcast %3 : vector<1x128xf32> to vector<32x128xf32>
    %5 = arith.addf %2, %4 : vector<32x128xf32>
    %6 = vector.extract_strided_slice %5 {offsets = [0, 0], sizes = [32, 64], strides = [1, 1]} : vector<32x128xf32> to vector<32x64xf32>
    %7 = vector.extract_strided_slice %5 {offsets = [0, 64], sizes = [32, 64], strides = [1, 1]} : vector<32x128xf32> to vector<32x64xf32>
    %c0_5 = arith.constant 0 : index
    %c0_6 = arith.constant 0 : index
    %8 = vector.load %arg3[%c0_5, %c0_6] : memref<32x32xf32, #tpu.memory_space<vmem>>, vector<32x32xf32>
    %cst_7 = arith.constant dense<0.000000e+00> : vector<32x64xf32>
    %9 = tpu.matmul %8, %6, %cst_7 {dimension_numbers = #tpu.dot_dimension_numbers<[1], [0], [0], [1], [0, 0, 1, 1], [], []>} : vector<32x32xf32>, vector<32x64xf32>, vector<32x64xf32> -> vector<32x64xf32>
    %10 = vector.extract_strided_slice %9 {offsets = [0, 0], sizes = [16, 64], strides = [1, 1]} : vector<32x64xf32> to vector<16x64xf32>
    %11 = vector.extract_strided_slice %9 {offsets = [16, 0], sizes = [16, 64], strides = [1, 1]} : vector<32x64xf32> to vector<16x64xf32>
    %c0_8 = arith.constant 0 : index
    %c0_9 = arith.constant 0 : index
    %c0_10 = arith.constant 0 : index
    %12 = vector.load %arg4[%c0_8, %c0_9, %c0_10] : memref<8x64x128xf32, #tpu.memory_space<vmem>>, vector<8x64x128xf32>
    %13 = tpu.concatenate %12, %12 in 0 : vector<8x64x128xf32>, vector<8x64x128xf32> -> vector<16x64x128xf32>
    %14 = vector.shape_cast %10 : vector<16x64xf32> to vector<16x64x1xf32>
    %15 = vector.broadcast %14 : vector<16x64x1xf32> to vector<16x64x128xf32>
    %16 = arith.mulf %15, %13 : vector<16x64x128xf32>
    %cst_11 = arith.constant dense<0.000000e+00> : vector<16x128xf32>
    %17 = vector.multi_reduction <add>, %16, %cst_11 [1] : vector<16x64x128xf32> to vector<16x128xf32>
    %18 = vector.shape_cast %11 : vector<16x64xf32> to vector<16x64x1xf32>
    %19 = vector.broadcast %18 : vector<16x64x1xf32> to vector<16x64x128xf32>
    %20 = arith.mulf %19, %13 : vector<16x64x128xf32>
    %cst_12 = arith.constant dense<0.000000e+00> : vector<16x128xf32>
    %21 = vector.multi_reduction <add>, %20, %cst_12 [1] : vector<16x64x128xf32> to vector<16x128xf32>
    %22 = vector.extract_strided_slice %17 {offsets = [0, 0], sizes = [16, 64], strides = [1, 1]} : vector<16x128xf32> to vector<16x64xf32>
    %23 = vector.extract_strided_slice %21 {offsets = [0, 64], sizes = [16, 64], strides = [1, 1]} : vector<16x128xf32> to vector<16x64xf32>
    %24 = arith.subf %22, %23 : vector<16x64xf32>
    %25 = vector.extract_strided_slice %17 {offsets = [0, 64], sizes = [16, 64], strides = [1, 1]} : vector<16x128xf32> to vector<16x64xf32>
    %26 = vector.extract_strided_slice %21 {offsets = [0, 0], sizes = [16, 64], strides = [1, 1]} : vector<16x128xf32> to vector<16x64xf32>
    %27 = arith.addf %25, %26 : vector<16x64xf32>
    %28 = tpu.concatenate %24, %27 in 0 : vector<16x64xf32>, vector<16x64xf32> -> vector<32x64xf32>
    %c0_13 = arith.constant 0 : index
    %c0_14 = arith.constant 0 : index
    %29 = vector.load %arg5[%c0_13, %c0_14] : memref<32x32xf32, #tpu.memory_space<vmem>>, vector<32x32xf32>
    %cst_15 = arith.constant dense<0.000000e+00> : vector<32x64xf32>
    %30 = tpu.matmul %29, %28, %cst_15 {dimension_numbers = #tpu.dot_dimension_numbers<[1], [0], [0], [1], [0, 0, 1, 1], [], []>} : vector<32x32xf32>, vector<32x64xf32>, vector<32x64xf32> -> vector<32x64xf32>
    %31 = arith.addf %30, %7 : vector<32x64xf32>
    %c0_16 = arith.constant 0 : index
    %c0_17 = arith.constant 0 : index
    %32 = vector.load %arg6[%c0_16, %c0_17] : memref<64x64xf32, #tpu.memory_space<vmem>>, vector<64x64xf32>
    %cst_18 = arith.constant dense<0.000000e+00> : vector<32x64xf32>
    %33 = tpu.matmul %31, %32, %cst_18 {dimension_numbers = #tpu.dot_dimension_numbers<[1], [0], [0], [1], [0, 0, 1, 1], [], []>} : vector<32x64xf32>, vector<64x64xf32>, vector<32x64xf32> -> vector<32x64xf32>
    %c0_19 = arith.constant 0 : index
    %c0_20 = arith.constant 0 : index
    %34 = vector.load %arg7[%c0_19, %c0_20] : memref<1x64xf32, #tpu.memory_space<vmem>>, vector<1x64xf32>
    %35 = vector.broadcast %34 : vector<1x64xf32> to vector<32x64xf32>
    %36 = arith.addf %33, %35 : vector<32x64xf32>
    %c0_21 = arith.constant 0 : index
    %c0_22 = arith.constant 0 : index
    %37 = vector.load %arg8[%c0_21, %c0_22] : memref<32x64xf32, #tpu.memory_space<vmem>>, vector<32x64xf32>
    tpu.vector_store %arg8[%c0_21, %c0_22], %36 {strides = array<i32>} : memref<32x64xf32, #tpu.memory_space<vmem>>, vector<32x64xf32>,
    return
  }
}

</mosaic_0001>

<llo_original>
// kernel: _febw_forward.1
$region0: #{_febw_forward.1}
  #allocation0 [shape = 'u32[]', space=smem, size = 0x4, offset = 0x4, fixed_abs, tag = 'smem constant byte address 0x4 - core index']
  #allocation1 [shape = 'u32[72,128]{1,0:T(1,128)}', space=vmem, size = 0x9000, scoped, tag = 'internal scratch']
  %s0 = inlined_call_operand.vmem [shape: f32[32,64], index: 0, kind: input, shape index: {}]
  %s1 = inlined_call_operand.vmem [shape: f32[64,128], index: 1, kind: input, shape index: {}]
  %s2 = inlined_call_operand.vmem [shape: f32[1,128], index: 2, kind: input, shape index: {}]
  %s3 = inlined_call_operand.vmem [shape: f32[32,32], index: 3, kind: input, shape index: {}]
  %s4 = inlined_call_operand.vmem [shape: f32[8,64,128], index: 4, kind: input, shape index: {}]
  %s5 = inlined_call_operand.hbm [shape: f32[32,32], index: 5, kind: input, shape index: {}]
  %s6 = inlined_call_operand.hbm [shape: f32[64,64], index: 6, kind: input, shape index: {}]
  %s7 = inlined_call_operand.vmem [shape: f32[1,64], index: 7, kind: input, shape index: {}]
  %s8 = inlined_call_operand.vmem [shape: f32[32,64], index: 8, kind: output, shape index: {}]
  %s9 = sld [smem:[#allocation0]]
  $region50: #{_febw_forward.1} parent=0
    _
  %s11 = ssub.s32 1, %s9
  %s12 = scalar_select 0, %s11, %s9
  $region1: #{_febw_forward.1} parent=0
    #allocation2 [shape = 'u8[16384]{0}', space=vmem, size = 0x4000, scoped, tag = 'input window, operand 5, single buffered']
    #allocation3 [shape = 's32[1]{0}', space=sflag, size = 0x4, scoped, tag = 'scoped memory for _febw_forward.1']
    #allocation4 [shape = 'u8[32768]{0}', space=vmem, size = 0x8000, scoped, tag = 'input window, operand 6, single buffered']
    #allocation5 [shape = 's32[1]{0}', space=sflag, size = 0x4, scoped, tag = 'scoped memory for _febw_forward.1']
    %13 = vsyncpa [#allocation3], 0
    %14 = vsyncpa [#allocation5], 0
    // Predicated region
    $region2: #{_febw_forward.1} parent=1 // pred_check
      _
    $region3: #{_febw_forward.1} parent=1 // pred_check_branch
      %16 = sbr.rel (0) target = $region5
    $region4: #{_febw_forward.1} parent=1 // pred_region
      _
    $region5: #{_febw_forward.1} parent=1 // pred_fallthru
      _
    // Predicated region
    $region6: #{_febw_forward.1} parent=1 // pred_check
      _
    $region7: #{_febw_forward.1} parent=1 // pred_check_branch
      %18 = sbr.rel (0) target = $region9
    $region8: #{_febw_forward.1} parent=1 // pred_region
      _
    $region9: #{_febw_forward.1} parent=1 // pred_fallthru
      _
    // Predicated region
    $region10: #{_febw_forward.1} parent=1 // pred_check
      _
    $region11: #{_febw_forward.1} parent=1 // pred_check_branch
      %20 = sbr.rel (0) target = $region13
    $region12: #{_febw_forward.1} parent=1 // pred_region
      _
    $region13: #{_febw_forward.1} parent=1 // pred_fallthru
      _
    // Predicated region
    $region14: #{_febw_forward.1} parent=1 // pred_check
      _
    $region15: #{_febw_forward.1} parent=1 // pred_check_branch
      %22 = sbr.rel (0) target = $region17
    $region16: #{_febw_forward.1} parent=1 // pred_region
      _
    $region17: #{_febw_forward.1} parent=1 // pred_fallthru
      _
    // Predicated region
    $region18: #{_febw_forward.1} parent=1 // pred_check
      _
    $region19: #{_febw_forward.1} parent=1 // pred_check_branch
      %24 = sbr.rel (0) target = $region21
    $region20: #{_febw_forward.1} parent=1 // pred_region
      _
    $region21: #{_febw_forward.1} parent=1 // pred_fallthru
      _
    // Predicated region
    $region22: #{_febw_forward.1} parent=1 // pred_check
      _
    $region23: #{_febw_forward.1} parent=1 // pred_check_branch
      %26 = sbr.rel (0) target = $region25
    $region24: #{_febw_forward.1} parent=1 // pred_region
      %28 = vsyncadd [#allocation3], 0
      %s29 = sshll.u32 %s5, 4
      %s30 = int_to_ptr.hbm [resolvable:$true] %s29
      %s31 = sshll.u32 [#allocation2], 4
      %s32 = int_to_ptr.vmem [resolvable:$true] %s31
      %37 = dma.hbm_to_vmem [thread:$0]  %s30, 512, %s32, [#allocation3], 128, 128, 8
    $region25: #{_febw_forward.1} parent=1 // pred_fallthru
      _
    // Predicated region
    $region26: #{_febw_forward.1} parent=1 // pred_check
      _
    $region27: #{_febw_forward.1} parent=1 // pred_check_branch
      %39 = sbr.rel (0) target = $region29
    $region28: #{_febw_forward.1} parent=1 // pred_region
      %41 = vsyncadd [#allocation5], 0
      %s42 = sshll.u32 %s6, 4
      %s43 = int_to_ptr.hbm [resolvable:$true] %s42
      %s44 = sshll.u32 [#allocation4], 4
      %s45 = int_to_ptr.vmem [resolvable:$true] %s44
      %50 = dma.hbm_to_vmem [thread:$0]  %s43, 1024, %s45, [#allocation5], 128, 128, 8
    $region29: #{_febw_forward.1} parent=1 // pred_fallthru
      _
    // Predicated region
    $region30: #{_febw_forward.1} parent=1 // pred_check
      _
    $region31: #{_febw_forward.1} parent=1 // pred_check_branch
      %52 = sbr.rel (0) target = $region33
    $region32: #{_febw_forward.1} parent=1 // pred_region
      _
    $region33: #{_febw_forward.1} parent=1 // pred_fallthru
      _
    // Predicated region
    $region34: #{_febw_forward.1} parent=1 // pred_check
      _
    $region35: #{_febw_forward.1} parent=1 // pred_check_branch
      %54 = sbr.rel (0) target = $region37
    $region36: #{_febw_forward.1} parent=1 // pred_region
      %56 = dma.done [#allocation3], 512
    $region37: #{_febw_forward.1} parent=1 // pred_fallthru
      _
    // Predicated region
    $region38: #{_febw_forward.1} parent=1 // pred_check
      _
    $region39: #{_febw_forward.1} parent=1 // pred_check_branch
      %58 = sbr.rel (0) target = $region41
    $region40: #{_febw_forward.1} parent=1 // pred_region
      %60 = dma.done [#allocation5], 1024
    $region41: #{_febw_forward.1} parent=1 // pred_fallthru
      _
    %v61 = vld [vmem:[%s0] sm:$0xff]
    %v62 = vld [vmem:[%s0 + $0x8] sm:$0xff]
    %v63 = vld [vmem:[%s0 + $0x10] sm:$0xff]
    %v64 = vld [vmem:[%s0 + $0x18] sm:$0xff]
    %v65 = vld [vmem:[%s1] sm:$0xff]
    %v66 = vld [vmem:[%s1 + $0x8] sm:$0xff]
    %v67 = vld [vmem:[%s1 + $0x10] sm:$0xff]
    %v68 = vld [vmem:[%s1 + $0x18] sm:$0xff]
    %v69 = vld [vmem:[%s1 + $0x20] sm:$0xff]
    %v70 = vld [vmem:[%s1 + $0x28] sm:$0xff]
    %v71 = vld [vmem:[%s1 + $0x30] sm:$0xff]
    %v72 = vld [vmem:[%s1 + $0x38] sm:$0xff]
    %v73 = vld [vmem:[%s2] sm:$0x1]
    %v75 = vperm.slane %v73, 0
    %vm77 = vcmask 523264
    %v79 = vsel %vm77, %v61, 0
    %v82 = vsel %vm77, %v62, 0
    %v85 = vsel %vm77, %v63, 0
    %v88 = vsel %vm77, %v64, 0
    %90 = vmatpush.msra.mxu0 0.0
    %91 = vmatpush.msra.mxu0 0.0
    %92 = vmatpush.msra.mxu0 0.0
    %93 = vmatpush.msra.mxu0 0.0
    %94 = vmatpush.msra.mxu0 0.0
    %95 = vmatpush.msra.mxu0 0.0
    %96 = vmatpush.msra.mxu0 0.0
    %97 = vmatpush.msra.mxu0 0.0
    %98 = vmatpush.msra.mxu0 %v72
    %99 = vmatpush.msra.mxu0 %v71
    %100 = vmatpush.msra.mxu0 %v70
    %101 = vmatpush.msra.mxu0 %v69
    %102 = vmatpush.msra.mxu0 %v68
    %103 = vmatpush.msra.mxu0 %v67
    %104 = vmatpush.msra.mxu0 %v66
    %105 = vmatpush.msra.mxu0 %v65
    %106 = vmatmul.f32.gmra.mxu0 %v79
    %v107 = vpop.f32.mrf.mxu0
    %v108 = vadd.f32 %v75, %v107
    %109 = vmatmul.f32.gmra.mxu0 %v82
    %v110 = vpop.f32.mrf.mxu0
    %v111 = vadd.f32 %v75, %v110
    %112 = vmatmul.f32.gmra.mxu0 %v85
    %v113 = vpop.f32.mrf.mxu0
    %v114 = vadd.f32 %v75, %v113
    %115 = vmatmul.f32.gmra.mxu0 %v88
    %v116 = vpop.f32.mrf.mxu0
    %v117 = vadd.f32 %v75, %v116
    %118 = vdwg.mxu0
    %v119 = vld [vmem:[%s3] sm:$0xff]
    %v120 = vld [vmem:[%s3 + $0x8] sm:$0xff]
    %v121 = vld [vmem:[%s3 + $0x10] sm:$0xff]
    %v122 = vld [vmem:[%s3 + $0x18] sm:$0xff]
    %vm123 = vcmask 261120
    %v125 = vsel %vm123, %v119, 0
    %v128 = vsel %vm123, %v120, 0
    %v131 = vsel %vm123, %v121, 0
    %v134 = vsel %vm123, %v122, 0
    %136 = vmatpush.msra.mxu0 0.0
    %137 = vmatpush.msra.mxu0 0.0
    %138 = vmatpush.msra.mxu0 0.0
    %139 = vmatpush.msra.mxu0 0.0
    %140 = vmatpush.msra.mxu0 0.0
    %141 = vmatpush.msra.mxu0 0.0
    %142 = vmatpush.msra.mxu0 0.0
    %143 = vmatpush.msra.mxu0 0.0
    %144 = vmatpush.msra.mxu0 0.0
    %145 = vmatpush.msra.mxu0 0.0
    %146 = vmatpush.msra.mxu0 0.0
    %147 = vmatpush.msra.mxu0 0.0
    %148 = vmatpush.msra.mxu0 %v117
    %149 = vmatpush.msra.mxu0 %v114
    %150 = vmatpush.msra.mxu0 %v111
    %151 = vmatpush.msra.mxu0 %v108
    %152 = vmatmul.f32.gmra.mxu0 %v125
    %v153 = vpop.f32.mrf.mxu0
    %v154 = vadd.f32 0.0, %v153
    %155 = vmatmul.f32.gmra.mxu0 %v128
    %v156 = vpop.f32.mrf.mxu0
    %v157 = vadd.f32 0.0, %v156
    %158 = vmatmul.f32.gmra.mxu0 %v131
    %v159 = vpop.f32.mrf.mxu0
    %v160 = vadd.f32 0.0, %v159
    %161 = vmatmul.f32.gmra.mxu0 %v134
    %v162 = vpop.f32.mrf.mxu0
    %v163 = vadd.f32 0.0, %v162
    %164 = vdwg.mxu0
    %v165 = vld [vmem:[%s4] sm:$0xff]
    %v166 = vld [vmem:[%s4 + $0x8] sm:$0xff]
    %v167 = vld [vmem:[%s4 + $0x10] sm:$0xff]
    %v168 = vld [vmem:[%s4 + $0x18] sm:$0xff]
    %v169 = vld [vmem:[%s4 + $0x20] sm:$0xff]
    %v170 = vld [vmem:[%s4 + $0x28] sm:$0xff]
    %v171 = vld [vmem:[%s4 + $0x30] sm:$0xff]
    %v172 = vld [vmem:[%s4 + $0x38] sm:$0xff]
    %v173 = vld [vmem:[%s4 + $0x40] sm:$0xff]
    %v174 = vld [vmem:[%s4 + $0x48] sm:$0xff]
    %v175 = vld [vmem:[%s4 + $0x50] sm:$0xff]
    %v176 = vld [vmem:[%s4 + $0x58] sm:$0xff]
    %v177 = vld [vmem:[%s4 + $0x60] sm:$0xff]
    %v178 = vld [vmem:[%s4 + $0x68] sm:$0xff]
    %v179 = vld [vmem:[%s4 + $0x70] sm:$0xff]
    %v180 = vld [vmem:[%s4 + $0x78] sm:$0xff]
    %v181 = vld [vmem:[%s4 + $0x80] sm:$0xff]
    %v182 = vld [vmem:[%s4 + $0x88] sm:$0xff]
    %v183 = vld [vmem:[%s4 + $0x90] sm:$0xff]
    %v184 = vld [vmem:[%s4 + $0x98] sm:$0xff]
    %v185 = vld [vmem:[%s4 + $0xa0] sm:$0xff]
    %v186 = vld [vmem:[%s4 + $0xa8] sm:$0xff]
    %v187 = vld [vmem:[%s4 + $0xb0] sm:$0xff]
    %v188 = vld [vmem:[%s4 + $0xb8] sm:$0xff]
    %v189 = vld [vmem:[%s4 + $0xc0] sm:$0xff]
    %v190 = vld [vmem:[%s4 + $0xc8] sm:$0xff]
    %v191 = vld [vmem:[%s4 + $0xd0] sm:$0xff]
    %v192 = vld [vmem:[%s4 + $0xd8] sm:$0xff]
    %v193 = vld [vmem:[%s4 + $0xe0] sm:$0xff]
    %v194 = vld [vmem:[%s4 + $0xe8] sm:$0xff]
    %v195 = vld [vmem:[%s4 + $0xf0] sm:$0xff]
    %v196 = vld [vmem:[%s4 + $0xf8] sm:$0xff]
    %v197 = vld [vmem:[%s4 + $0x100] sm:$0xff]
    %v198 = vld [vmem:[%s4 + $0x108] sm:$0xff]
    %v199 = vld [vmem:[%s4 + $0x110] sm:$0xff]
    %v200 = vld [vmem:[%s4 + $0x118] sm:$0xff]
    %v201 = vld [vmem:[%s4 + $0x120] sm:$0xff]
    %v202 = vld [vmem:[%s4 + $0x128] sm:$0xff]
    %v203 = vld [vmem:[%s4 + $0x130] sm:$0xff]
    %v204 = vld [vmem:[%s4 + $0x138] sm:$0xff]
    %v205 = vld [vmem:[%s4 + $0x140] sm:$0xff]
    %v206 = vld [vmem:[%s4 + $0x148] sm:$0xff]
    %v207 = vld [vmem:[%s4 + $0x150] sm:$0xff]
    %v208 = vld [vmem:[%s4 + $0x158] sm:$0xff]
    %v209 = vld [vmem:[%s4 + $0x160] sm:$0xff]
    %v210 = vld [vmem:[%s4 + $0x168] sm:$0xff]
    %v211 = vld [vmem:[%s4 + $0x170] sm:$0xff]
    %v212 = vld [vmem:[%s4 + $0x178] sm:$0xff]
    %v213 = vld [vmem:[%s4 + $0x180] sm:$0xff]
    %v214 = vld [vmem:[%s4 + $0x188] sm:$0xff]
    %v215 = vld [vmem:[%s4 + $0x190] sm:$0xff]
    %v216 = vld [vmem:[%s4 + $0x198] sm:$0xff]
    %v217 = vld [vmem:[%s4 + $0x1a0] sm:$0xff]
    %v218 = vld [vmem:[%s4 + $0x1a8] sm:$0xff]
    %v219 = vld [vmem:[%s4 + $0x1b0] sm:$0xff]
    %v220 = vld [vmem:[%s4 + $0x1b8] sm:$0xff]
    %v221 = vld [vmem:[%s4 + $0x1c0] sm:$0xff]
    %v222 = vld [vmem:[%s4 + $0x1c8] sm:$0xff]
    %v223 = vld [vmem:[%s4 + $0x1d0] sm:$0xff]
    %v224 = vld [vmem:[%s4 + $0x1d8] sm:$0xff]
    %v225 = vld [vmem:[%s4 + $0x1e0] sm:$0xff]
    %v226 = vld [vmem:[%s4 + $0x1e8] sm:$0xff]
    %v227 = vld [vmem:[%s4 + $0x1f0] sm:$0xff]
    %v228 = vld [vmem:[%s4 + $0x1f8] sm:$0xff]
    %v229 = vperm.slane %v154, 0
    %v230 = vlaneseq
    %v231 = vshrl.u32 %v230, 7
    %233 = vset.pattern.permute.xlu0 %v231
    %234 = vperm.xlu0 %233, %v229
    %v235 = vpop.permute.xlu0 %234
    %v236 = vlaneseq
    %v237 = vshrl.u32 %v236, 7
    %v238 = vadd.s32 %v237, 8
    %239 = vset.pattern.permute.xlu0 %v238
    %240 = vperm.xlu0 %239, %v229
    %v241 = vpop.permute.xlu0 %240
    %v242 = vlaneseq
    %v243 = vshrl.u32 %v242, 7
    %v244 = vadd.s32 %v243, 16
    %245 = vset.pattern.permute.xlu0 %v244
    %246 = vperm.xlu0 %245, %v229
    %v247 = vpop.permute.xlu0 %246
    %v248 = vlaneseq
    %v249 = vshrl.u32 %v248, 7
    %v250 = vadd.s32 %v249, 24
    %251 = vset.pattern.permute.xlu0 %v250
    %252 = vperm.xlu0 %251, %v229
    %v253 = vpop.permute.xlu0 %252
    %v254 = vlaneseq
    %v255 = vshrl.u32 %v254, 7
    %v256 = vadd.s32 %v255, 32
    %257 = vset.pattern.permute.xlu0 %v256
    %258 = vperm.xlu0 %257, %v229
    %v259 = vpop.permute.xlu0 %258
    %v260 = vlaneseq
    %v261 = vshrl.u32 %v260, 7
    %v262 = vadd.s32 %v261, 40
    %263 = vset.pattern.permute.xlu0 %v262
    %264 = vperm.xlu0 %263, %v229
    %v265 = vpop.permute.xlu0 %264
    %v266 = vlaneseq
    %v267 = vshrl.u32 %v266, 7
    %v268 = vadd.s32 %v267, 48
    %269 = vset.pattern.permute.xlu0 %v268
    %270 = vperm.xlu0 %269, %v229
    %v271 = vpop.permute.xlu0 %270
    %v272 = vlaneseq
    %v273 = vshrl.u32 %v272, 7
    %v274 = vadd.s32 %v273, 56
    %275 = vset.pattern.permute.xlu0 %v274
    %276 = vperm.xlu0 %275, %v229
    %v277 = vpop.permute.xlu0 %276
    %v278 = vperm.slane %v154, 1
    %v279 = vlaneseq
    %v280 = vshrl.u32 %v279, 7
    %282 = vset.pattern.permute.xlu0 %v280
    %283 = vperm.xlu0 %282, %v278
    %v284 = vpop.permute.xlu0 %283
    %v285 = vlaneseq
    %v286 = vshrl.u32 %v285, 7
    %v287 = vadd.s32 %v286, 8
    %288 = vset.pattern.permute.xlu0 %v287
    %289 = vperm.xlu0 %288, %v278
    %v290 = vpop.permute.xlu0 %289
    %v291 = vlaneseq
    %v292 = vshrl.u32 %v291, 7
    %v293 = vadd.s32 %v292, 16
    %294 = vset.pattern.permute.xlu0 %v293
    %295 = vperm.xlu0 %294, %v278
    %v296 = vpop.permute.xlu0 %295
    %v297 = vlaneseq
    %v298 = vshrl.u32 %v297, 7
    %v299 = vadd.s32 %v298, 24
    %300 = vset.pattern.permute.xlu0 %v299
    %301 = vperm.xlu0 %300, %v278
    %v302 = vpop.permute.xlu0 %301
    %v303 = vlaneseq
    %v304 = vshrl.u32 %v303, 7
    %v305 = vadd.s32 %v304, 32
    %306 = vset.pattern.permute.xlu0 %v305
    %307 = vperm.xlu0 %306, %v278
    %v308 = vpop.permute.xlu0 %307
    %v309 = vlaneseq
    %v310 = vshrl.u32 %v309, 7
    %v311 = vadd.s32 %v310, 40
    %312 = vset.pattern.permute.xlu0 %v311
    %313 = vperm.xlu0 %312, %v278
    %v314 = vpop.permute.xlu0 %313
    %v315 = vlaneseq
    %v316 = vshrl.u32 %v315, 7
    %v317 = vadd.s32 %v316, 48
    %318 = vset.pattern.permute.xlu0 %v317
    %319 = vperm.xlu0 %318, %v278
    %v320 = vpop.permute.xlu0 %319
    %v321 = vlaneseq
    %v322 = vshrl.u32 %v321, 7
    %v323 = vadd.s32 %v322, 56
    %324 = vset.pattern.permute.xlu0 %v323
    %325 = vperm.xlu0 %324, %v278
    %v326 = vpop.permute.xlu0 %325
    %v327 = vperm.slane %v154, 2
    %v328 = vlaneseq
    %v329 = vshrl.u32 %v328, 7
    %331 = vset.pattern.permute.xlu0 %v329
    %332 = vperm.xlu0 %331, %v327
    %v333 = vpop.permute.xlu0 %332
    %v334 = vlaneseq
    %v335 = vshrl.u32 %v334, 7
    %v336 = vadd.s32 %v335, 8
    %337 = vset.pattern.permute.xlu0 %v336
    %338 = vperm.xlu0 %337, %v327
    %v339 = vpop.permute.xlu0 %338
    %v340 = vlaneseq
    %v341 = vshrl.u32 %v340, 7
    %v342 = vadd.s32 %v341, 16
    %343 = vset.pattern.permute.xlu0 %v342
    %344 = vperm.xlu0 %343, %v327
    %v345 = vpop.permute.xlu0 %344
    %v346 = vlaneseq
    %v347 = vshrl.u32 %v346, 7
    %v348 = vadd.s32 %v347, 24
    %349 = vset.pattern.permute.xlu0 %v348
    %350 = vperm.xlu0 %349, %v327
    %v351 = vpop.permute.xlu0 %350
    %v352 = vlaneseq
    %v353 = vshrl.u32 %v352, 7
    %v354 = vadd.s32 %v353, 32
    %355 = vset.pattern.permute.xlu0 %v354
    %356 = vperm.xlu0 %355, %v327
    %v357 = vpop.permute.xlu0 %356
    %v358 = vlaneseq
    %v359 = vshrl.u32 %v358, 7
    %v360 = vadd.s32 %v359, 40
    %361 = vset.pattern.permute.xlu0 %v360
    %362 = vperm.xlu0 %361, %v327
    %v363 = vpop.permute.xlu0 %362
    %v364 = vlaneseq
    %v365 = vshrl.u32 %v364, 7
    %v366 = vadd.s32 %v365, 48
    %367 = vset.pattern.permute.xlu0 %v366
    %368 = vperm.xlu0 %367, %v327
    %v369 = vpop.permute.xlu0 %368
    %v370 = vlaneseq
    %v371 = vshrl.u32 %v370, 7
    %v372 = vadd.s32 %v371, 56
    %373 = vset.pattern.permute.xlu0 %v372
    %374 = vperm.xlu0 %373, %v327
    %v375 = vpop.permute.xlu0 %374
    %v376 = vperm.slane %v154, 3
    %v377 = vlaneseq
    %v378 = vshrl.u32 %v377, 7
    %380 = vset.pattern.permute.xlu0 %v378
    %381 = vperm.xlu0 %380, %v376
    %v382 = vpop.permute.xlu0 %381
    %v383 = vlaneseq
    %v384 = vshrl.u32 %v383, 7
    %v385 = vadd.s32 %v384, 8
    %386 = vset.pattern.permute.xlu0 %v385
    %387 = vperm.xlu0 %386, %v376
    %v388 = vpop.permute.xlu0 %387
    %v389 = vlaneseq
    %v390 = vshrl.u32 %v389, 7
    %v391 = vadd.s32 %v390, 16
    %392 = vset.pattern.permute.xlu0 %v391
    %393 = vperm.xlu0 %392, %v376
    %v394 = vpop.permute.xlu0 %393
    %v395 = vlaneseq
    %v396 = vshrl.u32 %v395, 7
    %v397 = vadd.s32 %v396, 24
    %398 = vset.pattern.permute.xlu0 %v397
    %399 = vperm.xlu0 %398, %v376
    %v400 = vpop.permute.xlu0 %399
    %v401 = vlaneseq
    %v402 = vshrl.u32 %v401, 7
    %v403 = vadd.s32 %v402, 32
    %404 = vset.pattern.permute.xlu0 %v403
    %405 = vperm.xlu0 %404, %v376
    %v406 = vpop.permute.xlu0 %405
    %v407 = vlaneseq
    %v408 = vshrl.u32 %v407, 7
    %v409 = vadd.s32 %v408, 40
    %410 = vset.pattern.permute.xlu0 %v409
    %411 = vperm.xlu0 %410, %v376
    %v412 = vpop.permute.xlu0 %411
    %v413 = vlaneseq
    %v414 = vshrl.u32 %v413, 7
    %v415 = vadd.s32 %v414, 48
    %416 = vset.pattern.permute.xlu0 %v415
    %417 = vperm.xlu0 %416, %v376
    %v418 = vpop.permute.xlu0 %417
    %v419 = vlaneseq
    %v420 = vshrl.u32 %v419, 7
    %v421 = vadd.s32 %v420, 56
    %422 = vset.pattern.permute.xlu0 %v421
    %423 = vperm.xlu0 %422, %v376
    %v424 = vpop.permute.xlu0 %423
    %v425 = vperm.slane %v154, 4
    %v426 = vlaneseq
    %v427 = vshrl.u32 %v426, 7
    %429 = vset.pattern.permute.xlu0 %v427
    %430 = vperm.xlu0 %429, %v425
    %v431 = vpop.permute.xlu0 %430
    %v432 = vlaneseq
    %v433 = vshrl.u32 %v432, 7
    %v434 = vadd.s32 %v433, 8
    %435 = vset.pattern.permute.xlu0 %v434
    %436 = vperm.xlu0 %435, %v425
    %v437 = vpop.permute.xlu0 %436
    %v438 = vlaneseq
    %v439 = vshrl.u32 %v438, 7
    %v440 = vadd.s32 %v439, 16
    %441 = vset.pattern.permute.xlu0 %v440
    %442 = vperm.xlu0 %441, %v425
    %v443 = vpop.permute.xlu0 %442
    %v444 = vlaneseq
    %v445 = vshrl.u32 %v444, 7
    %v446 = vadd.s32 %v445, 24
    %447 = vset.pattern.permute.xlu0 %v446
    %448 = vperm.xlu0 %447, %v425
    %v449 = vpop.permute.xlu0 %448
    %v450 = vlaneseq
    %v451 = vshrl.u32 %v450, 7
    %v452 = vadd.s32 %v451, 32
    %453 = vset.pattern.permute.xlu0 %v452
    %454 = vperm.xlu0 %453, %v425
    %v455 = vpop.permute.xlu0 %454
    %v456 = vlaneseq
    %v457 = vshrl.u32 %v456, 7
    %v458 = vadd.s32 %v457, 40
    %459 = vset.pattern.permute.xlu0 %v458
    %460 = vperm.xlu0 %459, %v425
    %v461 = vpop.permute.xlu0 %460
    %v462 = vlaneseq
    %v463 = vshrl.u32 %v462, 7
    %v464 = vadd.s32 %v463, 48
    %465 = vset.pattern.permute.xlu0 %v464
    %466 = vperm.xlu0 %465, %v425
    %v467 = vpop.permute.xlu0 %466
    %v468 = vlaneseq
    %v469 = vshrl.u32 %v468, 7
    %v470 = vadd.s32 %v469, 56
    %471 = vset.pattern.permute.xlu0 %v470
    %472 = vperm.xlu0 %471, %v425
    %v473 = vpop.permute.xlu0 %472
    %v474 = vperm.slane %v154, 5
    %v475 = vlaneseq
    %v476 = vshrl.u32 %v475, 7
    %478 = vset.pattern.permute.xlu0 %v476
    %479 = vperm.xlu0 %478, %v474
    %v480 = vpop.permute.xlu0 %479
    %v481 = vlaneseq
    %v482 = vshrl.u32 %v481, 7
    %v483 = vadd.s32 %v482, 8
    %484 = vset.pattern.permute.xlu0 %v483
    %485 = vperm.xlu0 %484, %v474
    %v486 = vpop.permute.xlu0 %485
    %v487 = vlaneseq
    %v488 = vshrl.u32 %v487, 7
    %v489 = vadd.s32 %v488, 16
    %490 = vset.pattern.permute.xlu0 %v489
    %491 = vperm.xlu0 %490, %v474
    %v492 = vpop.permute.xlu0 %491
    %v493 = vlaneseq
    %v494 = vshrl.u32 %v493, 7
    %v495 = vadd.s32 %v494, 24
    %496 = vset.pattern.permute.xlu0 %v495
    %497 = vperm.xlu0 %496, %v474
    %v498 = vpop.permute.xlu0 %497
    %v499 = vlaneseq
    %v500 = vshrl.u32 %v499, 7
    %v501 = vadd.s32 %v500, 32
    %502 = vset.pattern.permute.xlu0 %v501
    %503 = vperm.xlu0 %502, %v474
    %v504 = vpop.permute.xlu0 %503
    %v505 = vlaneseq
    %v506 = vshrl.u32 %v505, 7
    %v507 = vadd.s32 %v506, 40
    %508 = vset.pattern.permute.xlu0 %v507
    %509 = vperm.xlu0 %508, %v474
    %v510 = vpop.permute.xlu0 %509
    %v511 = vlaneseq
    %v512 = vshrl.u32 %v511, 7
    %v513 = vadd.s32 %v512, 48
    %514 = vset.pattern.permute.xlu0 %v513
    %515 = vperm.xlu0 %514, %v474
    %v516 = vpop.permute.xlu0 %515
    %v517 = vlaneseq
    %v518 = vshrl.u32 %v517, 7
    %v519 = vadd.s32 %v518, 56
    %520 = vset.pattern.permute.xlu0 %v519
    %521 = vperm.xlu0 %520, %v474
    %v522 = vpop.permute.xlu0 %521
    %v523 = vperm.slane %v154, 6
    %v524 = vlaneseq
    %v525 = vshrl.u32 %v524, 7
    %527 = vset.pattern.permute.xlu0 %v525
    %528 = vperm.xlu0 %527, %v523
    %v529 = vpop.permute.xlu0 %528
    %v530 = vlaneseq
    %v531 = vshrl.u32 %v530, 7
    %v532 = vadd.s32 %v531, 8
    %533 = vset.pattern.permute.xlu0 %v532
    %534 = vperm.xlu0 %533, %v523
    %v535 = vpop.permute.xlu0 %534
    %v536 = vlaneseq
    %v537 = vshrl.u32 %v536, 7
    %v538 = vadd.s32 %v537, 16
    %539 = vset.pattern.permute.xlu0 %v538
    %540 = vperm.xlu0 %539, %v523
    %v541 = vpop.permute.xlu0 %540
    %v542 = vlaneseq
    %v543 = vshrl.u32 %v542, 7
    %v544 = vadd.s32 %v543, 24
    %545 = vset.pattern.permute.xlu0 %v544
    %546 = vperm.xlu0 %545, %v523
    %v547 = vpop.permute.xlu0 %546
    %v548 = vlaneseq
    %v549 = vshrl.u32 %v548, 7
    %v550 = vadd.s32 %v549, 32
    %551 = vset.pattern.permute.xlu0 %v550
    %552 = vperm.xlu0 %551, %v523
    %v553 = vpop.permute.xlu0 %552
    %v554 = vlaneseq
    %v555 = vshrl.u32 %v554, 7
    %v556 = vadd.s32 %v555, 40
    %557 = vset.pattern.permute.xlu0 %v556
    %558 = vperm.xlu0 %557, %v523
    %v559 = vpop.permute.xlu0 %558
    %v560 = vlaneseq
    %v561 = vshrl.u32 %v560, 7
    %v562 = vadd.s32 %v561, 48
    %563 = vset.pattern.permute.xlu0 %v562
    %564 = vperm.xlu0 %563, %v523
    %v565 = vpop.permute.xlu0 %564
    %v566 = vlaneseq
    %v567 = vshrl.u32 %v566, 7
    %v568 = vadd.s32 %v567, 56
    %569 = vset.pattern.permute.xlu0 %v568
    %570 = vperm.xlu0 %569, %v523
    %v571 = vpop.permute.xlu0 %570
    %v572 = vperm.slane %v154, 7
    %v573 = vlaneseq
    %v574 = vshrl.u32 %v573, 7
    %576 = vset.pattern.permute.xlu0 %v574
    %577 = vperm.xlu0 %576, %v572
    %v578 = vpop.permute.xlu0 %577
    %v579 = vlaneseq
    %v580 = vshrl.u32 %v579, 7
    %v581 = vadd.s32 %v580, 8
    %582 = vset.pattern.permute.xlu0 %v581
    %583 = vperm.xlu0 %582, %v572
    %v584 = vpop.permute.xlu0 %583
    %v585 = vlaneseq
    %v586 = vshrl.u32 %v585, 7
    %v587 = vadd.s32 %v586, 16
    %588 = vset.pattern.permute.xlu0 %v587
    %589 = vperm.xlu0 %588, %v572
    %v590 = vpop.permute.xlu0 %589
    %v591 = vlaneseq
    %v592 = vshrl.u32 %v591, 7
    %v593 = vadd.s32 %v592, 24
    %594 = vset.pattern.permute.xlu0 %v593
    %595 = vperm.xlu0 %594, %v572
    %v596 = vpop.permute.xlu0 %595
    %v597 = vlaneseq
    %v598 = vshrl.u32 %v597, 7
    %v599 = vadd.s32 %v598, 32
    %600 = vset.pattern.permute.xlu0 %v599
    %601 = vperm.xlu0 %600, %v572
    %v602 = vpop.permute.xlu0 %601
    %v603 = vlaneseq
    %v604 = vshrl.u32 %v603, 7
    %v605 = vadd.s32 %v604, 40
    %606 = vset.pattern.permute.xlu0 %v605
    %607 = vperm.xlu0 %606, %v572
    %v608 = vpop.permute.xlu0 %607
    %v609 = vlaneseq
    %v610 = vshrl.u32 %v609, 7
    %v611 = vadd.s32 %v610, 48
    %612 = vset.pattern.permute.xlu0 %v611
    %613 = vperm.xlu0 %612, %v572
    %v614 = vpop.permute.xlu0 %613
    %v615 = vlaneseq
    %v616 = vshrl.u32 %v615, 7
    %v617 = vadd.s32 %v616, 56
    %618 = vset.pattern.permute.xlu0 %v617
    %619 = vperm.xlu0 %618, %v572
    %v620 = vpop.permute.xlu0 %619
    %v621 = vperm.slane %v157, 0
    %v622 = vlaneseq
    %v623 = vshrl.u32 %v622, 7
    %625 = vset.pattern.permute.xlu0 %v623
    %626 = vperm.xlu0 %625, %v621
    %v627 = vpop.permute.xlu0 %626
    %v628 = vlaneseq
    %v629 = vshrl.u32 %v628, 7
    %v630 = vadd.s32 %v629, 8
    %631 = vset.pattern.permute.xlu0 %v630
    %632 = vperm.xlu0 %631, %v621
    %v633 = vpop.permute.xlu0 %632
    %v634 = vlaneseq
    %v635 = vshrl.u32 %v634, 7
    %v636 = vadd.s32 %v635, 16
    %637 = vset.pattern.permute.xlu0 %v636
    %638 = vperm.xlu0 %637, %v621
    %v639 = vpop.permute.xlu0 %638
    %v640 = vlaneseq
    %v641 = vshrl.u32 %v640, 7
    %v642 = vadd.s32 %v641, 24
    %643 = vset.pattern.permute.xlu0 %v642
    %644 = vperm.xlu0 %643, %v621
    %v645 = vpop.permute.xlu0 %644
    %v646 = vlaneseq
    %v647 = vshrl.u32 %v646, 7
    %v648 = vadd.s32 %v647, 32
    %649 = vset.pattern.permute.xlu0 %v648
    %650 = vperm.xlu0 %649, %v621
    %v651 = vpop.permute.xlu0 %650
    %v652 = vlaneseq
    %v653 = vshrl.u32 %v652, 7
    %v654 = vadd.s32 %v653, 40
    %655 = vset.pattern.permute.xlu0 %v654
    %656 = vperm.xlu0 %655, %v621
    %v657 = vpop.permute.xlu0 %656
    %v658 = vlaneseq
    %v659 = vshrl.u32 %v658, 7
    %v660 = vadd.s32 %v659, 48
    %661 = vset.pattern.permute.xlu0 %v660
    %662 = vperm.xlu0 %661, %v621
    %v663 = vpop.permute.xlu0 %662
    %v664 = vlaneseq
    %v665 = vshrl.u32 %v664, 7
    %v666 = vadd.s32 %v665, 56
    %667 = vset.pattern.permute.xlu0 %v666
    %668 = vperm.xlu0 %667, %v621
    %v669 = vpop.permute.xlu0 %668
    %v670 = vperm.slane %v157, 1
    %v671 = vlaneseq
    %v672 = vshrl.u32 %v671, 7
    %674 = vset.pattern.permute.xlu0 %v672
    %675 = vperm.xlu0 %674, %v670
    %v676 = vpop.permute.xlu0 %675
    %v677 = vlaneseq
    %v678 = vshrl.u32 %v677, 7
    %v679 = vadd.s32 %v678, 8
    %680 = vset.pattern.permute.xlu0 %v679
    %681 = vperm.xlu0 %680, %v670
    %v682 = vpop.permute.xlu0 %681
    %v683 = vlaneseq
    %v684 = vshrl.u32 %v683, 7
    %v685 = vadd.s32 %v684, 16
    %686 = vset.pattern.permute.xlu0 %v685
    %687 = vperm.xlu0 %686, %v670
    %v688 = vpop.permute.xlu0 %687
    %v689 = vlaneseq
    %v690 = vshrl.u32 %v689, 7
    %v691 = vadd.s32 %v690, 24
    %692 = vset.pattern.permute.xlu0 %v691
    %693 = vperm.xlu0 %692, %v670
    %v694 = vpop.permute.xlu0 %693
    %v695 = vlaneseq
    %v696 = vshrl.u32 %v695, 7
    %v697 = vadd.s32 %v696, 32
    %698 = vset.pattern.permute.xlu0 %v697
    %699 = vperm.xlu0 %698, %v670
    %v700 = vpop.permute.xlu0 %699
    %v701 = vlaneseq
    %v702 = vshrl.u32 %v701, 7
    %v703 = vadd.s32 %v702, 40
    %704 = vset.pattern.permute.xlu0 %v703
    %705 = vperm.xlu0 %704, %v670
    %v706 = vpop.permute.xlu0 %705
    %v707 = vlaneseq
    %v708 = vshrl.u32 %v707, 7
    %v709 = vadd.s32 %v708, 48
    %710 = vset.pattern.permute.xlu0 %v709
    %711 = vperm.xlu0 %710, %v670
    %v712 = vpop.permute.xlu0 %711
    %v713 = vlaneseq
    %v714 = vshrl.u32 %v713, 7
    %v715 = vadd.s32 %v714, 56
    %716 = vset.pattern.permute.xlu0 %v715
    %717 = vperm.xlu0 %716, %v670
    %v718 = vpop.permute.xlu0 %717
    %v719 = vperm.slane %v157, 2
    %v720 = vlaneseq
    %v721 = vshrl.u32 %v720, 7
    %723 = vset.pattern.permute.xlu0 %v721
    %724 = vperm.xlu0 %723, %v719
    %v725 = vpop.permute.xlu0 %724
    %v726 = vlaneseq
    %v727 = vshrl.u32 %v726, 7
    %v728 = vadd.s32 %v727, 8
    %729 = vset.pattern.permute.xlu0 %v728
    %730 = vperm.xlu0 %729, %v719
    %v731 = vpop.permute.xlu0 %730
    %v732 = vlaneseq
    %v733 = vshrl.u32 %v732, 7
    %v734 = vadd.s32 %v733, 16
    %735 = vset.pattern.permute.xlu0 %v734
    %736 = vperm.xlu0 %735, %v719
    %v737 = vpop.permute.xlu0 %736
    %v738 = vlaneseq
    %v739 = vshrl.u32 %v738, 7
    %v740 = vadd.s32 %v739, 24
    %741 = vset.pattern.permute.xlu0 %v740
    %742 = vperm.xlu0 %741, %v719
    %v743 = vpop.permute.xlu0 %742
    %v744 = vlaneseq
    %v745 = vshrl.u32 %v744, 7
    %v746 = vadd.s32 %v745, 32
    %747 = vset.pattern.permute.xlu0 %v746
    %748 = vperm.xlu0 %747, %v719
    %v749 = vpop.permute.xlu0 %748
    %v750 = vlaneseq
    %v751 = vshrl.u32 %v750, 7
    %v752 = vadd.s32 %v751, 40
    %753 = vset.pattern.permute.xlu0 %v752
    %754 = vperm.xlu0 %753, %v719
    %v755 = vpop.permute.xlu0 %754
    %v756 = vlaneseq
    %v757 = vshrl.u32 %v756, 7
    %v758 = vadd.s32 %v757, 48
    %759 = vset.pattern.permute.xlu0 %v758
    %760 = vperm.xlu0 %759, %v719
    %v761 = vpop.permute.xlu0 %760
    %v762 = vlaneseq
    %v763 = vshrl.u32 %v762, 7
    %v764 = vadd.s32 %v763, 56
    %765 = vset.pattern.permute.xlu0 %v764
    %766 = vperm.xlu0 %765, %v719
    %v767 = vpop.permute.xlu0 %766
    %v768 = vperm.slane %v157, 3
    %v769 = vlaneseq
    %v770 = vshrl.u32 %v769, 7
    %772 = vset.pattern.permute.xlu0 %v770
    %773 = vperm.xlu0 %772, %v768
    %v774 = vpop.permute.xlu0 %773
    %v775 = vlaneseq
    %v776 = vshrl.u32 %v775, 7
    %v777 = vadd.s32 %v776, 8
    %778 = vset.pattern.permute.xlu0 %v777
    %779 = vperm.xlu0 %778, %v768
    %v780 = vpop.permute.xlu0 %779
    %v781 = vlaneseq
    %v782 = vshrl.u32 %v781, 7
    %v783 = vadd.s32 %v782, 16
    %784 = vset.pattern.permute.xlu0 %v783
    %785 = vperm.xlu0 %784, %v768
    %v786 = vpop.permute.xlu0 %785
    %v787 = vlaneseq
    %v788 = vshrl.u32 %v787, 7
    %v789 = vadd.s32 %v788, 24
    %790 = vset.pattern.permute.xlu0 %v789
    %791 = vperm.xlu0 %790, %v768
    %v792 = vpop.permute.xlu0 %791
    %v793 = vlaneseq
    %v794 = vshrl.u32 %v793, 7
    %v795 = vadd.s32 %v794, 32
    %796 = vset.pattern.permute.xlu0 %v795
    %797 = vperm.xlu0 %796, %v768
    %v798 = vpop.permute.xlu0 %797
    %v799 = vlaneseq
    %v800 = vshrl.u32 %v799, 7
    %v801 = vadd.s32 %v800, 40
    %802 = vset.pattern.permute.xlu0 %v801
    %803 = vperm.xlu0 %802, %v768
    %v804 = vpop.permute.xlu0 %803
    %v805 = vlaneseq
    %v806 = vshrl.u32 %v805, 7
    %v807 = vadd.s32 %v806, 48
    %808 = vset.pattern.permute.xlu0 %v807
    %809 = vperm.xlu0 %808, %v768
    %v810 = vpop.permute.xlu0 %809
    %v811 = vlaneseq
    %v812 = vshrl.u32 %v811, 7
    %v813 = vadd.s32 %v812, 56
    %814 = vset.pattern.permute.xlu0 %v813
    %815 = vperm.xlu0 %814, %v768
    %v816 = vpop.permute.xlu0 %815
    %v817 = vperm.slane %v157, 4
    %v818 = vlaneseq
    %v819 = vshrl.u32 %v818, 7
    %821 = vset.pattern.permute.xlu0 %v819
    %822 = vperm.xlu0 %821, %v817
    %v823 = vpop.permute.xlu0 %822
    %v824 = vlaneseq
    %v825 = vshrl.u32 %v824, 7
    %v826 = vadd.s32 %v825, 8
    %827 = vset.pattern.permute.xlu0 %v826
    %828 = vperm.xlu0 %827, %v817
    %v829 = vpop.permute.xlu0 %828
    %v830 = vlaneseq
    %v831 = vshrl.u32 %v830, 7
    %v832 = vadd.s32 %v831, 16
    %833 = vset.pattern.permute.xlu0 %v832
    %834 = vperm.xlu0 %833, %v817
    %v835 = vpop.permute.xlu0 %834
    %v836 = vlaneseq
    %v837 = vshrl.u32 %v836, 7
    %v838 = vadd.s32 %v837, 24
    %839 = vset.pattern.permute.xlu0 %v838
    %840 = vperm.xlu0 %839, %v817
    %v841 = vpop.permute.xlu0 %840
    %v842 = vlaneseq
    %v843 = vshrl.u32 %v842, 7
    %v844 = vadd.s32 %v843, 32
    %845 = vset.pattern.permute.xlu0 %v844
    %846 = vperm.xlu0 %845, %v817
    %v847 = vpop.permute.xlu0 %846
    %v848 = vlaneseq
    %v849 = vshrl.u32 %v848, 7
    %v850 = vadd.s32 %v849, 40
    %851 = vset.pattern.permute.xlu0 %v850
    %852 = vperm.xlu0 %851, %v817
    %v853 = vpop.permute.xlu0 %852
    %v854 = vlaneseq
    %v855 = vshrl.u32 %v854, 7
    %v856 = vadd.s32 %v855, 48
    %857 = vset.pattern.permute.xlu0 %v856
    %858 = vperm.xlu0 %857, %v817
    %v859 = vpop.permute.xlu0 %858
    %v860 = vlaneseq
    %v861 = vshrl.u32 %v860, 7
    %v862 = vadd.s32 %v861, 56
    %863 = vset.pattern.permute.xlu0 %v862
    %864 = vperm.xlu0 %863, %v817
    %v865 = vpop.permute.xlu0 %864
    %v866 = vperm.slane %v157, 5
    %v867 = vlaneseq
    %v868 = vshrl.u32 %v867, 7
    %870 = vset.pattern.permute.xlu0 %v868
    %871 = vperm.xlu0 %870, %v866
    %v872 = vpop.permute.xlu0 %871
    %v873 = vlaneseq
    %v874 = vshrl.u32 %v873, 7
    %v875 = vadd.s32 %v874, 8
    %876 = vset.pattern.permute.xlu0 %v875
    %877 = vperm.xlu0 %876, %v866
    %v878 = vpop.permute.xlu0 %877
    %v879 = vlaneseq
    %v880 = vshrl.u32 %v879, 7
    %v881 = vadd.s32 %v880, 16
    %882 = vset.pattern.permute.xlu0 %v881
    %883 = vperm.xlu0 %882, %v866
    %v884 = vpop.permute.xlu0 %883
    %v885 = vlaneseq
    %v886 = vshrl.u32 %v885, 7
    %v887 = vadd.s32 %v886, 24
    %888 = vset.pattern.permute.xlu0 %v887
    %889 = vperm.xlu0 %888, %v866
    %v890 = vpop.permute.xlu0 %889
    %v891 = vlaneseq
    %v892 = vshrl.u32 %v891, 7
    %v893 = vadd.s32 %v892, 32
    %894 = vset.pattern.permute.xlu0 %v893
    %895 = vperm.xlu0 %894, %v866
    %v896 = vpop.permute.xlu0 %895
    %v897 = vlaneseq
    %v898 = vshrl.u32 %v897, 7
    %v899 = vadd.s32 %v898, 40
    %900 = vset.pattern.permute.xlu0 %v899
    %901 = vperm.xlu0 %900, %v866
    %v902 = vpop.permute.xlu0 %901
    %v903 = vlaneseq
    %v904 = vshrl.u32 %v903, 7
    %v905 = vadd.s32 %v904, 48
    %906 = vset.pattern.permute.xlu0 %v905
    %907 = vperm.xlu0 %906, %v866
    %v908 = vpop.permute.xlu0 %907
    %v909 = vlaneseq
    %v910 = vshrl.u32 %v909, 7
    %v911 = vadd.s32 %v910, 56
    %912 = vset.pattern.permute.xlu0 %v911
    %913 = vperm.xlu0 %912, %v866
    %v914 = vpop.permute.xlu0 %913
    %v915 = vperm.slane %v157, 6
    %v916 = vlaneseq
    %v917 = vshrl.u32 %v916, 7
    %919 = vset.pattern.permute.xlu0 %v917
    %920 = vperm.xlu0 %919, %v915
    %v921 = vpop.permute.xlu0 %920
    %v922 = vlaneseq
    %v923 = vshrl.u32 %v922, 7
    %v924 = vadd.s32 %v923, 8
    %925 = vset.pattern.permute.xlu0 %v924
    %926 = vperm.xlu0 %925, %v915
    %v927 = vpop.permute.xlu0 %926
    %v928 = vlaneseq
    %v929 = vshrl.u32 %v928, 7
    %v930 = vadd.s32 %v929, 16
    %931 = vset.pattern.permute.xlu0 %v930
    %932 = vperm.xlu0 %931, %v915
    %v933 = vpop.permute.xlu0 %932
    %v934 = vlaneseq
    %v935 = vshrl.u32 %v934, 7
    %v936 = vadd.s32 %v935, 24
    %937 = vset.pattern.permute.xlu0 %v936
    %938 = vperm.xlu0 %937, %v915
    %v939 = vpop.permute.xlu0 %938
    %v940 = vlaneseq
    %v941 = vshrl.u32 %v940, 7
    %v942 = vadd.s32 %v941, 32
    %943 = vset.pattern.permute.xlu0 %v942
    %944 = vperm.xlu0 %943, %v915
    %v945 = vpop.permute.xlu0 %944
    %v946 = vlaneseq
    %v947 = vshrl.u32 %v946, 7
    %v948 = vadd.s32 %v947, 40
    %949 = vset.pattern.permute.xlu0 %v948
    %950 = vperm.xlu0 %949, %v915
    %v951 = vpop.permute.xlu0 %950
    %v952 = vlaneseq
    %v953 = vshrl.u32 %v952, 7
    %v954 = vadd.s32 %v953, 48
    %955 = vset.pattern.permute.xlu0 %v954
    %956 = vperm.xlu0 %955, %v915
    %v957 = vpop.permute.xlu0 %956
    %v958 = vlaneseq
    %v959 = vshrl.u32 %v958, 7
    %v960 = vadd.s32 %v959, 56
    %961 = vset.pattern.permute.xlu0 %v960
    %962 = vperm.xlu0 %961, %v915
    %v963 = vpop.permute.xlu0 %962
    %v964 = vperm.slane %v157, 7
    %v965 = vlaneseq
    %v966 = vshrl.u32 %v965, 7
    %968 = vset.pattern.permute.xlu0 %v966
    %969 = vperm.xlu0 %968, %v964
    %v970 = vpop.permute.xlu0 %969
    %v971 = vlaneseq
    %v972 = vshrl.u32 %v971, 7
    %v973 = vadd.s32 %v972, 8
    %974 = vset.pattern.permute.xlu0 %v973
    %975 = vperm.xlu0 %974, %v964
    %v976 = vpop.permute.xlu0 %975
    %v977 = vlaneseq
    %v978 = vshrl.u32 %v977, 7
    %v979 = vadd.s32 %v978, 16
    %980 = vset.pattern.permute.xlu0 %v979
    %981 = vperm.xlu0 %980, %v964
    %v982 = vpop.permute.xlu0 %981
    %v983 = vlaneseq
    %v984 = vshrl.u32 %v983, 7
    %v985 = vadd.s32 %v984, 24
    %986 = vset.pattern.permute.xlu0 %v985
    %987 = vperm.xlu0 %986, %v964
    %v988 = vpop.permute.xlu0 %987
    %v989 = vlaneseq
    %v990 = vshrl.u32 %v989, 7
    %v991 = vadd.s32 %v990, 32
    %992 = vset.pattern.permute.xlu0 %v991
    %993 = vperm.xlu0 %992, %v964
    %v994 = vpop.permute.xlu0 %993
    %v995 = vlaneseq
    %v996 = vshrl.u32 %v995, 7
    %v997 = vadd.s32 %v996, 40
    %998 = vset.pattern.permute.xlu0 %v997
    %999 = vperm.xlu0 %998, %v964
    %v1000 = vpop.permute.xlu0 %999
    %v1001 = vlaneseq
    %v1002 = vshrl.u32 %v1001, 7
    %v1003 = vadd.s32 %v1002, 48
    %1004 = vset.pattern.permute.xlu0 %v1003
    %1005 = vperm.xlu0 %1004, %v964
    %v1006 = vpop.permute.xlu0 %1005
    %v1007 = vlaneseq
    %v1008 = vshrl.u32 %v1007, 7
    %v1009 = vadd.s32 %v1008, 56
    %1010 = vset.pattern.permute.xlu0 %v1009
    %1011 = vperm.xlu0 %1010, %v964
    %v1012 = vpop.permute.xlu0 %1011
    %v1013 = vmul.f32 %v235, %v165
    %v1014 = vmul.f32 %v241, %v166
    %v1015 = vmul.f32 %v247, %v167
    %v1016 = vmul.f32 %v253, %v168
    %v1017 = vmul.f32 %v259, %v169
    %v1018 = vmul.f32 %v265, %v170
    %v1019 = vmul.f32 %v271, %v171
    %v1020 = vmul.f32 %v277, %v172
    %v1021 = vmul.f32 %v284, %v173
    %v1022 = vmul.f32 %v290, %v174
    %v1023 = vmul.f32 %v296, %v175
    %v1024 = vmul.f32 %v302, %v176
    %v1025 = vmul.f32 %v308, %v177
    %v1026 = vmul.f32 %v314, %v178
    %v1027 = vmul.f32 %v320, %v179
    %v1028 = vmul.f32 %v326, %v180
    %v1029 = vmul.f32 %v333, %v181
    %v1030 = vmul.f32 %v339, %v182
    %v1031 = vmul.f32 %v345, %v183
    %v1032 = vmul.f32 %v351, %v184
    %v1033 = vmul.f32 %v357, %v185
    %v1034 = vmul.f32 %v363, %v186
    %v1035 = vmul.f32 %v369, %v187
    %v1036 = vmul.f32 %v375, %v188
    %v1037 = vmul.f32 %v382, %v189
    %v1038 = vmul.f32 %v388, %v190
    %v1039 = vmul.f32 %v394, %v191
    %v1040 = vmul.f32 %v400, %v192
    %v1041 = vmul.f32 %v406, %v193
    %v1042 = vmul.f32 %v412, %v194
    %v1043 = vmul.f32 %v418, %v195
    %v1044 = vmul.f32 %v424, %v196
    %v1045 = vmul.f32 %v431, %v197
    %v1046 = vmul.f32 %v437, %v198
    %v1047 = vmul.f32 %v443, %v199
    %v1048 = vmul.f32 %v449, %v200
    %v1049 = vmul.f32 %v455, %v201
    %v1050 = vmul.f32 %v461, %v202
    %v1051 = vmul.f32 %v467, %v203
    %v1052 = vmul.f32 %v473, %v204
    %v1053 = vmul.f32 %v480, %v205
    %v1054 = vmul.f32 %v486, %v206
    %v1055 = vmul.f32 %v492, %v207
    %v1056 = vmul.f32 %v498, %v208
    %v1057 = vmul.f32 %v504, %v209
    %v1058 = vmul.f32 %v510, %v210
    %v1059 = vmul.f32 %v516, %v211
    %v1060 = vmul.f32 %v522, %v212
    %v1061 = vmul.f32 %v529, %v213
    %v1062 = vmul.f32 %v535, %v214
    %v1063 = vmul.f32 %v541, %v215
    %v1064 = vmul.f32 %v547, %v216
    %v1065 = vmul.f32 %v553, %v217
    %v1066 = vmul.f32 %v559, %v218
    %v1067 = vmul.f32 %v565, %v219
    %v1068 = vmul.f32 %v571, %v220
    %v1069 = vmul.f32 %v578, %v221
    %v1070 = vmul.f32 %v584, %v222
    %v1071 = vmul.f32 %v590, %v223
    %v1072 = vmul.f32 %v596, %v224
    %v1073 = vmul.f32 %v602, %v225
    %v1074 = vmul.f32 %v608, %v226
    %v1075 = vmul.f32 %v614, %v227
    %v1076 = vmul.f32 %v620, %v228
    %v1077 = vmul.f32 %v627, %v165
    %v1078 = vmul.f32 %v633, %v166
    %v1079 = vmul.f32 %v639, %v167
    %v1080 = vmul.f32 %v645, %v168
    %v1081 = vmul.f32 %v651, %v169
    %v1082 = vmul.f32 %v657, %v170
    %v1083 = vmul.f32 %v663, %v171
    %v1084 = vmul.f32 %v669, %v172
    %v1085 = vmul.f32 %v676, %v173
    %v1086 = vmul.f32 %v682, %v174
    %v1087 = vmul.f32 %v688, %v175
    %v1088 = vmul.f32 %v694, %v176
    %v1089 = vmul.f32 %v700, %v177
    %v1090 = vmul.f32 %v706, %v178
    %v1091 = vmul.f32 %v712, %v179
    %v1092 = vmul.f32 %v718, %v180
    %v1093 = vmul.f32 %v725, %v181
    %v1094 = vmul.f32 %v731, %v182
    %v1095 = vmul.f32 %v737, %v183
    %v1096 = vmul.f32 %v743, %v184
    %v1097 = vmul.f32 %v749, %v185
    %v1098 = vmul.f32 %v755, %v186
    %v1099 = vmul.f32 %v761, %v187
    %v1100 = vmul.f32 %v767, %v188
    %v1101 = vmul.f32 %v774, %v189
    %v1102 = vmul.f32 %v780, %v190
    %v1103 = vmul.f32 %v786, %v191
    %v1104 = vmul.f32 %v792, %v192
    %v1105 = vmul.f32 %v798, %v193
    %v1106 = vmul.f32 %v804, %v194
    %v1107 = vmul.f32 %v810, %v195
    %v1108 = vmul.f32 %v816, %v196
    %v1109 = vmul.f32 %v823, %v197
    %v1110 = vmul.f32 %v829, %v198
    %v1111 = vmul.f32 %v835, %v199
    %v1112 = vmul.f32 %v841, %v200
    %v1113 = vmul.f32 %v847, %v201
    %v1114 = vmul.f32 %v853, %v202
    %v1115 = vmul.f32 %v859, %v203
    %v1116 = vmul.f32 %v865, %v204
    %v1117 = vmul.f32 %v872, %v205
    %v1118 = vmul.f32 %v878, %v206
    %v1119 = vmul.f32 %v884, %v207
    %v1120 = vmul.f32 %v890, %v208
    %v1121 = vmul.f32 %v896, %v209
    %v1122 = vmul.f32 %v902, %v210
    %v1123 = vmul.f32 %v908, %v211
    %v1124 = vmul.f32 %v914, %v212
    %v1125 = vmul.f32 %v921, %v213
    %v1126 = vmul.f32 %v927, %v214
    %v1127 = vmul.f32 %v933, %v215
    %v1128 = vmul.f32 %v939, %v216
    %v1129 = vmul.f32 %v945, %v217
    %v1130 = vmul.f32 %v951, %v218
    %v1131 = vmul.f32 %v957, %v219
    %v1132 = vmul.f32 %v963, %v220
    %v1133 = vmul.f32 %v970, %v221
    %v1134 = vmul.f32 %v976, %v222
    %v1135 = vmul.f32 %v982, %v223
    %v1136 = vmul.f32 %v988, %v224
    %v1137 = vmul.f32 %v994, %v225
    %v1138 = vmul.f32 %v1000, %v226
    %v1139 = vmul.f32 %v1006, %v227
    %v1140 = vmul.f32 %v1012, %v228
    %v1141 = vadd.f32 %v1013, %v1014
    %v1142 = vadd.f32 %v1141, %v1015
    %v1143 = vadd.f32 %v1142, %v1016
    %v1144 = vadd.f32 %v1143, %v1017
    %v1145 = vadd.f32 %v1144, %v1018
    %v1146 = vadd.f32 %v1145, %v1019
    %v1147 = vadd.f32 %v1146, %v1020
    %v1148 = vrot.slane %v1147, 4
    %v1149 = vadd.f32 %v1147, %v1148
    %v1150 = vrot.slane %v1149, 2
    %v1151 = vadd.f32 %v1149, %v1150
    %v1152 = vrot.slane %v1151, 1
    %v1153 = vadd.f32 %v1151, %v1152
    %v1154 = vadd.f32 %v1021, %v1022
    %v1155 = vadd.f32 %v1154, %v1023
    %v1156 = vadd.f32 %v1155, %v1024
    %v1157 = vadd.f32 %v1156, %v1025
    %v1158 = vadd.f32 %v1157, %v1026
    %v1159 = vadd.f32 %v1158, %v1027
    %v1160 = vadd.f32 %v1159, %v1028
    %v1161 = vrot.slane %v1160, 4
    %v1162 = vadd.f32 %v1160, %v1161
    %v1163 = vrot.slane %v1162, 2
    %v1164 = vadd.f32 %v1162, %v1163
    %v1165 = vrot.slane %v1164, 1
    %v1166 = vadd.f32 %v1164, %v1165
    %v1167 = vadd.f32 %v1029, %v1030
    %v1168 = vadd.f32 %v1167, %v1031
    %v1169 = vadd.f32 %v1168, %v1032
    %v1170 = vadd.f32 %v1169, %v1033
    %v1171 = vadd.f32 %v1170, %v1034
    %v1172 = vadd.f32 %v1171, %v1035
    %v1173 = vadd.f32 %v1172, %v1036
    %v1174 = vrot.slane %v1173, 4
    %v1175 = vadd.f32 %v1173, %v1174
    %v1176 = vrot.slane %v1175, 2
    %v1177 = vadd.f32 %v1175, %v1176
    %v1178 = vrot.slane %v1177, 1
    %v1179 = vadd.f32 %v1177, %v1178
    %v1180 = vadd.f32 %v1037, %v1038
    %v1181 = vadd.f32 %v1180, %v1039
    %v1182 = vadd.f32 %v1181, %v1040
    %v1183 = vadd.f32 %v1182, %v1041
    %v1184 = vadd.f32 %v1183, %v1042
    %v1185 = vadd.f32 %v1184, %v1043
    %v1186 = vadd.f32 %v1185, %v1044
    %v1187 = vrot.slane %v1186, 4
    %v1188 = vadd.f32 %v1186, %v1187
    %v1189 = vrot.slane %v1188, 2
    %v1190 = vadd.f32 %v1188, %v1189
    %v1191 = vrot.slane %v1190, 1
    %v1192 = vadd.f32 %v1190, %v1191
    %v1193 = vadd.f32 %v1045, %v1046
    %v1194 = vadd.f32 %v1193, %v1047
    %v1195 = vadd.f32 %v1194, %v1048
    %v1196 = vadd.f32 %v1195, %v1049
    %v1197 = vadd.f32 %v1196, %v1050
    %v1198 = vadd.f32 %v1197, %v1051
    %v1199 = vadd.f32 %v1198, %v1052
    %v1200 = vrot.slane %v1199, 4
    %v1201 = vadd.f32 %v1199, %v1200
    %v1202 = vrot.slane %v1201, 2
    %v1203 = vadd.f32 %v1201, %v1202
    %v1204 = vrot.slane %v1203, 1
    %v1205 = vadd.f32 %v1203, %v1204
    %v1206 = vadd.f32 %v1053, %v1054
    %v1207 = vadd.f32 %v1206, %v1055
    %v1208 = vadd.f32 %v1207, %v1056
    %v1209 = vadd.f32 %v1208, %v1057
    %v1210 = vadd.f32 %v1209, %v1058
    %v1211 = vadd.f32 %v1210, %v1059
    %v1212 = vadd.f32 %v1211, %v1060
    %v1213 = vrot.slane %v1212, 4
    %v1214 = vadd.f32 %v1212, %v1213
    %v1215 = vrot.slane %v1214, 2
    %v1216 = vadd.f32 %v1214, %v1215
    %v1217 = vrot.slane %v1216, 1
    %v1218 = vadd.f32 %v1216, %v1217
    %v1219 = vadd.f32 %v1061, %v1062
    %v1220 = vadd.f32 %v1219, %v1063
    %v1221 = vadd.f32 %v1220, %v1064
    %v1222 = vadd.f32 %v1221, %v1065
    %v1223 = vadd.f32 %v1222, %v1066
    %v1224 = vadd.f32 %v1223, %v1067
    %v1225 = vadd.f32 %v1224, %v1068
    %v1226 = vrot.slane %v1225, 4
    %v1227 = vadd.f32 %v1225, %v1226
    %v1228 = vrot.slane %v1227, 2
    %v1229 = vadd.f32 %v1227, %v1228
    %v1230 = vrot.slane %v1229, 1
    %v1231 = vadd.f32 %v1229, %v1230
    %v1232 = vadd.f32 %v1069, %v1070
    %v1233 = vadd.f32 %v1232, %v1071
    %v1234 = vadd.f32 %v1233, %v1072
    %v1235 = vadd.f32 %v1234, %v1073
    %v1236 = vadd.f32 %v1235, %v1074
    %v1237 = vadd.f32 %v1236, %v1075
    %v1238 = vadd.f32 %v1237, %v1076
    %v1239 = vrot.slane %v1238, 4
    %v1240 = vadd.f32 %v1238, %v1239
    %v1241 = vrot.slane %v1240, 2
    %v1242 = vadd.f32 %v1240, %v1241
    %v1243 = vrot.slane %v1242, 1
    %v1244 = vadd.f32 %v1242, %v1243
    %v1245 = vadd.f32 %v1077, %v1078
    %v1246 = vadd.f32 %v1245, %v1079
    %v1247 = vadd.f32 %v1246, %v1080
    %v1248 = vadd.f32 %v1247, %v1081
    %v1249 = vadd.f32 %v1248, %v1082
    %v1250 = vadd.f32 %v1249, %v1083
    %v1251 = vadd.f32 %v1250, %v1084
    %v1252 = vrot.slane %v1251, 4
    %v1253 = vadd.f32 %v1251, %v1252
    %v1254 = vrot.slane %v1253, 2
    %v1255 = vadd.f32 %v1253, %v1254
    %v1256 = vrot.slane %v1255, 1
    %v1257 = vadd.f32 %v1255, %v1256
    %v1258 = vadd.f32 %v1085, %v1086
    %v1259 = vadd.f32 %v1258, %v1087
    %v1260 = vadd.f32 %v1259, %v1088
    %v1261 = vadd.f32 %v1260, %v1089
    %v1262 = vadd.f32 %v1261, %v1090
    %v1263 = vadd.f32 %v1262, %v1091
    %v1264 = vadd.f32 %v1263, %v1092
    %v1265 = vrot.slane %v1264, 4
    %v1266 = vadd.f32 %v1264, %v1265
    %v1267 = vrot.slane %v1266, 2
    %v1268 = vadd.f32 %v1266, %v1267
    %v1269 = vrot.slane %v1268, 1
    %v1270 = vadd.f32 %v1268, %v1269
    %v1271 = vadd.f32 %v1093, %v1094
    %v1272 = vadd.f32 %v1271, %v1095
    %v1273 = vadd.f32 %v1272, %v1096
    %v1274 = vadd.f32 %v1273, %v1097
    %v1275 = vadd.f32 %v1274, %v1098
    %v1276 = vadd.f32 %v1275, %v1099
    %v1277 = vadd.f32 %v1276, %v1100
    %v1278 = vrot.slane %v1277, 4
    %v1279 = vadd.f32 %v1277, %v1278
    %v1280 = vrot.slane %v1279, 2
    %v1281 = vadd.f32 %v1279, %v1280
    %v1282 = vrot.slane %v1281, 1
    %v1283 = vadd.f32 %v1281, %v1282
    %v1284 = vadd.f32 %v1101, %v1102
    %v1285 = vadd.f32 %v1284, %v1103
    %v1286 = vadd.f32 %v1285, %v1104
    %v1287 = vadd.f32 %v1286, %v1105
    %v1288 = vadd.f32 %v1287, %v1106
    %v1289 = vadd.f32 %v1288, %v1107
    %v1290 = vadd.f32 %v1289, %v1108
    %v1291 = vrot.slane %v1290, 4
    %v1292 = vadd.f32 %v1290, %v1291
    %v1293 = vrot.slane %v1292, 2
    %v1294 = vadd.f32 %v1292, %v1293
    %v1295 = vrot.slane %v1294, 1
    %v1296 = vadd.f32 %v1294, %v1295
    %v1297 = vadd.f32 %v1109, %v1110
    %v1298 = vadd.f32 %v1297, %v1111
    %v1299 = vadd.f32 %v1298, %v1112
    %v1300 = vadd.f32 %v1299, %v1113
    %v1301 = vadd.f32 %v1300, %v1114
    %v1302 = vadd.f32 %v1301, %v1115
    %v1303 = vadd.f32 %v1302, %v1116
    %v1304 = vrot.slane %v1303, 4
    %v1305 = vadd.f32 %v1303, %v1304
    %v1306 = vrot.slane %v1305, 2
    %v1307 = vadd.f32 %v1305, %v1306
    %v1308 = vrot.slane %v1307, 1
    %v1309 = vadd.f32 %v1307, %v1308
    %v1310 = vadd.f32 %v1117, %v1118
    %v1311 = vadd.f32 %v1310, %v1119
    %v1312 = vadd.f32 %v1311, %v1120
    %v1313 = vadd.f32 %v1312, %v1121
    %v1314 = vadd.f32 %v1313, %v1122
    %v1315 = vadd.f32 %v1314, %v1123
    %v1316 = vadd.f32 %v1315, %v1124
    %v1317 = vrot.slane %v1316, 4
    %v1318 = vadd.f32 %v1316, %v1317
    %v1319 = vrot.slane %v1318, 2
    %v1320 = vadd.f32 %v1318, %v1319
    %v1321 = vrot.slane %v1320, 1
    %v1322 = vadd.f32 %v1320, %v1321
    %v1323 = vadd.f32 %v1125, %v1126
    %v1324 = vadd.f32 %v1323, %v1127
    %v1325 = vadd.f32 %v1324, %v1128
    %v1326 = vadd.f32 %v1325, %v1129
    %v1327 = vadd.f32 %v1326, %v1130
    %v1328 = vadd.f32 %v1327, %v1131
    %v1329 = vadd.f32 %v1328, %v1132
    %v1330 = vrot.slane %v1329, 4
    %v1331 = vadd.f32 %v1329, %v1330
    %v1332 = vrot.slane %v1331, 2
    %v1333 = vadd.f32 %v1331, %v1332
    %v1334 = vrot.slane %v1333, 1
    %v1335 = vadd.f32 %v1333, %v1334
    %v1336 = vadd.f32 %v1133, %v1134
    %v1337 = vadd.f32 %v1336, %v1135
    %v1338 = vadd.f32 %v1337, %v1136
    %v1339 = vadd.f32 %v1338, %v1137
    %v1340 = vadd.f32 %v1339, %v1138
    %v1341 = vadd.f32 %v1340, %v1139
    %v1342 = vadd.f32 %v1341, %v1140
    %v1343 = vrot.slane %v1342, 4
    %v1344 = vadd.f32 %v1342, %v1343
    %v1345 = vrot.slane %v1344, 2
    %v1346 = vadd.f32 %v1344, %v1345
    %v1347 = vrot.slane %v1346, 1
    %v1348 = vadd.f32 %v1346, %v1347
    %v1349 = vperm.slane %v160, 0
    %v1350 = vlaneseq
    %v1351 = vshrl.u32 %v1350, 7
    %1353 = vset.pattern.permute.xlu0 %v1351
    %1354 = vperm.xlu0 %1353, %v1349
    %v1355 = vpop.permute.xlu0 %1354
    %v1356 = vlaneseq
    %v1357 = vshrl.u32 %v1356, 7
    %v1358 = vadd.s32 %v1357, 8
    %1359 = vset.pattern.permute.xlu0 %v1358
    %1360 = vperm.xlu0 %1359, %v1349
    %v1361 = vpop.permute.xlu0 %1360
    %v1362 = vlaneseq
    %v1363 = vshrl.u32 %v1362, 7
    %v1364 = vadd.s32 %v1363, 16
    %1365 = vset.pattern.permute.xlu0 %v1364
    %1366 = vperm.xlu0 %1365, %v1349
    %v1367 = vpop.permute.xlu0 %1366
    %v1368 = vlaneseq
    %v1369 = vshrl.u32 %v1368, 7
    %v1370 = vadd.s32 %v1369, 24
    %1371 = vset.pattern.permute.xlu0 %v1370
    %1372 = vperm.xlu0 %1371, %v1349
    %v1373 = vpop.permute.xlu0 %1372
    %v1374 = vlaneseq
    %v1375 = vshrl.u32 %v1374, 7
    %v1376 = vadd.s32 %v1375, 32
    %1377 = vset.pattern.permute.xlu0 %v1376
    %1378 = vperm.xlu0 %1377, %v1349
    %v1379 = vpop.permute.xlu0 %1378
    %v1380 = vlaneseq
    %v1381 = vshrl.u32 %v1380, 7
    %v1382 = vadd.s32 %v1381, 40
    %1383 = vset.pattern.permute.xlu0 %v1382
    %1384 = vperm.xlu0 %1383, %v1349
    %v1385 = vpop.permute.xlu0 %1384
    %v1386 = vlaneseq
    %v1387 = vshrl.u32 %v1386, 7
    %v1388 = vadd.s32 %v1387, 48
    %1389 = vset.pattern.permute.xlu0 %v1388
    %1390 = vperm.xlu0 %1389, %v1349
    %v1391 = vpop.permute.xlu0 %1390
    %v1392 = vlaneseq
    %v1393 = vshrl.u32 %v1392, 7
    %v1394 = vadd.s32 %v1393, 56
    %1395 = vset.pattern.permute.xlu0 %v1394
    %1396 = vperm.xlu0 %1395, %v1349
    %v1397 = vpop.permute.xlu0 %1396
    %v1398 = vperm.slane %v160, 1
    %v1399 = vlaneseq
    %v1400 = vshrl.u32 %v1399, 7
    %1402 = vset.pattern.permute.xlu0 %v1400
    %1403 = vperm.xlu0 %1402, %v1398
    %v1404 = vpop.permute.xlu0 %1403
    %v1405 = vlaneseq
    %v1406 = vshrl.u32 %v1405, 7
    %v1407 = vadd.s32 %v1406, 8
    %1408 = vset.pattern.permute.xlu0 %v1407
    %1409 = vperm.xlu0 %1408, %v1398
    %v1410 = vpop.permute.xlu0 %1409
    %v1411 = vlaneseq
    %v1412 = vshrl.u32 %v1411, 7
    %v1413 = vadd.s32 %v1412, 16
    %1414 = vset.pattern.permute.xlu0 %v1413
    %1415 = vperm.xlu0 %1414, %v1398
    %v1416 = vpop.permute.xlu0 %1415
    %v1417 = vlaneseq
    %v1418 = vshrl.u32 %v1417, 7
    %v1419 = vadd.s32 %v1418, 24
    %1420 = vset.pattern.permute.xlu0 %v1419
    %1421 = vperm.xlu0 %1420, %v1398
    %v1422 = vpop.permute.xlu0 %1421
    %v1423 = vlaneseq
    %v1424 = vshrl.u32 %v1423, 7
    %v1425 = vadd.s32 %v1424, 32
    %1426 = vset.pattern.permute.xlu0 %v1425
    %1427 = vperm.xlu0 %1426, %v1398
    %v1428 = vpop.permute.xlu0 %1427
    %v1429 = vlaneseq
    %v1430 = vshrl.u32 %v1429, 7
    %v1431 = vadd.s32 %v1430, 40
    %1432 = vset.pattern.permute.xlu0 %v1431
    %1433 = vperm.xlu0 %1432, %v1398
    %v1434 = vpop.permute.xlu0 %1433
    %v1435 = vlaneseq
    %v1436 = vshrl.u32 %v1435, 7
    %v1437 = vadd.s32 %v1436, 48
    %1438 = vset.pattern.permute.xlu0 %v1437
    %1439 = vperm.xlu0 %1438, %v1398
    %v1440 = vpop.permute.xlu0 %1439
    %v1441 = vlaneseq
    %v1442 = vshrl.u32 %v1441, 7
    %v1443 = vadd.s32 %v1442, 56
    %1444 = vset.pattern.permute.xlu0 %v1443
    %1445 = vperm.xlu0 %1444, %v1398
    %v1446 = vpop.permute.xlu0 %1445
    %v1447 = vperm.slane %v160, 2
    %v1448 = vlaneseq
    %v1449 = vshrl.u32 %v1448, 7
    %1451 = vset.pattern.permute.xlu0 %v1449
    %1452 = vperm.xlu0 %1451, %v1447
    %v1453 = vpop.permute.xlu0 %1452
    %v1454 = vlaneseq
    %v1455 = vshrl.u32 %v1454, 7
    %v1456 = vadd.s32 %v1455, 8
    %1457 = vset.pattern.permute.xlu0 %v1456
    %1458 = vperm.xlu0 %1457, %v1447
    %v1459 = vpop.permute.xlu0 %1458
    %v1460 = vlaneseq
    %v1461 = vshrl.u32 %v1460, 7
    %v1462 = vadd.s32 %v1461, 16
    %1463 = vset.pattern.permute.xlu0 %v1462
    %1464 = vperm.xlu0 %1463, %v1447
    %v1465 = vpop.permute.xlu0 %1464
    %v1466 = vlaneseq
    %v1467 = vshrl.u32 %v1466, 7
    %v1468 = vadd.s32 %v1467, 24
    %1469 = vset.pattern.permute.xlu0 %v1468
    %1470 = vperm.xlu0 %1469, %v1447
    %v1471 = vpop.permute.xlu0 %1470
    %v1472 = vlaneseq
    %v1473 = vshrl.u32 %v1472, 7
    %v1474 = vadd.s32 %v1473, 32
    %1475 = vset.pattern.permute.xlu0 %v1474
    %1476 = vperm.xlu0 %1475, %v1447
    %v1477 = vpop.permute.xlu0 %1476
    %v1478 = vlaneseq
    %v1479 = vshrl.u32 %v1478, 7
    %v1480 = vadd.s32 %v1479, 40
    %1481 = vset.pattern.permute.xlu0 %v1480
    %1482 = vperm.xlu0 %1481, %v1447
    %v1483 = vpop.permute.xlu0 %1482
    %v1484 = vlaneseq
    %v1485 = vshrl.u32 %v1484, 7
    %v1486 = vadd.s32 %v1485, 48
    %1487 = vset.pattern.permute.xlu0 %v1486
    %1488 = vperm.xlu0 %1487, %v1447
    %v1489 = vpop.permute.xlu0 %1488
    %v1490 = vlaneseq
    %v1491 = vshrl.u32 %v1490, 7
    %v1492 = vadd.s32 %v1491, 56
    %1493 = vset.pattern.permute.xlu0 %v1492
    %1494 = vperm.xlu0 %1493, %v1447
    %v1495 = vpop.permute.xlu0 %1494
    %v1496 = vperm.slane %v160, 3
    %v1497 = vlaneseq
    %v1498 = vshrl.u32 %v1497, 7
    %1500 = vset.pattern.permute.xlu0 %v1498
    %1501 = vperm.xlu0 %1500, %v1496
    %v1502 = vpop.permute.xlu0 %1501
    %v1503 = vlaneseq
    %v1504 = vshrl.u32 %v1503, 7
    %v1505 = vadd.s32 %v1504, 8
    %1506 = vset.pattern.permute.xlu0 %v1505
    %1507 = vperm.xlu0 %1506, %v1496
    %v1508 = vpop.permute.xlu0 %1507
    %v1509 = vlaneseq
    %v1510 = vshrl.u32 %v1509, 7
    %v1511 = vadd.s32 %v1510, 16
    %1512 = vset.pattern.permute.xlu0 %v1511
    %1513 = vperm.xlu0 %1512, %v1496
    %v1514 = vpop.permute.xlu0 %1513
    %v1515 = vlaneseq
    %v1516 = vshrl.u32 %v1515, 7
    %v1517 = vadd.s32 %v1516, 24
    %1518 = vset.pattern.permute.xlu0 %v1517
    %1519 = vperm.xlu0 %1518, %v1496
    %v1520 = vpop.permute.xlu0 %1519
    %v1521 = vlaneseq
    %v1522 = vshrl.u32 %v1521, 7
    %v1523 = vadd.s32 %v1522, 32
    %1524 = vset.pattern.permute.xlu0 %v1523
    %1525 = vperm.xlu0 %1524, %v1496
    %v1526 = vpop.permute.xlu0 %1525
    %v1527 = vlaneseq
    %v1528 = vshrl.u32 %v1527, 7
    %v1529 = vadd.s32 %v1528, 40
    %1530 = vset.pattern.permute.xlu0 %v1529
    %1531 = vperm.xlu0 %1530, %v1496
    %v1532 = vpop.permute.xlu0 %1531
    %v1533 = vlaneseq
    %v1534 = vshrl.u32 %v1533, 7
    %v1535 = vadd.s32 %v1534, 48
    %1536 = vset.pattern.permute.xlu0 %v1535
    %1537 = vperm.xlu0 %1536, %v1496
    %v1538 = vpop.permute.xlu0 %1537
    %v1539 = vlaneseq
    %v1540 = vshrl.u32 %v1539, 7
    %v1541 = vadd.s32 %v1540, 56
    %1542 = vset.pattern.permute.xlu0 %v1541
    %1543 = vperm.xlu0 %1542, %v1496
    %v1544 = vpop.permute.xlu0 %1543
    %v1545 = vperm.slane %v160, 4
    %v1546 = vlaneseq
    %v1547 = vshrl.u32 %v1546, 7
    %1549 = vset.pattern.permute.xlu0 %v1547
    %1550 = vperm.xlu0 %1549, %v1545
    %v1551 = vpop.permute.xlu0 %1550
    %v1552 = vlaneseq
    %v1553 = vshrl.u32 %v1552, 7
    %v1554 = vadd.s32 %v1553, 8
    %1555 = vset.pattern.permute.xlu0 %v1554
    %1556 = vperm.xlu0 %1555, %v1545
    %v1557 = vpop.permute.xlu0 %1556
    %v1558 = vlaneseq
    %v1559 = vshrl.u32 %v1558, 7
    %v1560 = vadd.s32 %v1559, 16
    %1561 = vset.pattern.permute.xlu0 %v1560
    %1562 = vperm.xlu0 %1561, %v1545
    %v1563 = vpop.permute.xlu0 %1562
    %v1564 = vlaneseq
    %v1565 = vshrl.u32 %v1564, 7
    %v1566 = vadd.s32 %v1565, 24
    %1567 = vset.pattern.permute.xlu0 %v1566
    %1568 = vperm.xlu0 %1567, %v1545
    %v1569 = vpop.permute.xlu0 %1568
    %v1570 = vlaneseq
    %v1571 = vshrl.u32 %v1570, 7
    %v1572 = vadd.s32 %v1571, 32
    %1573 = vset.pattern.permute.xlu0 %v1572
    %1574 = vperm.xlu0 %1573, %v1545
    %v1575 = vpop.permute.xlu0 %1574
    %v1576 = vlaneseq
    %v1577 = vshrl.u32 %v1576, 7
    %v1578 = vadd.s32 %v1577, 40
    %1579 = vset.pattern.permute.xlu0 %v1578
    %1580 = vperm.xlu0 %1579, %v1545
    %v1581 = vpop.permute.xlu0 %1580
    %v1582 = vlaneseq
    %v1583 = vshrl.u32 %v1582, 7
    %v1584 = vadd.s32 %v1583, 48
    %1585 = vset.pattern.permute.xlu0 %v1584
    %1586 = vperm.xlu0 %1585, %v1545
    %v1587 = vpop.permute.xlu0 %1586
    %v1588 = vlaneseq
    %v1589 = vshrl.u32 %v1588, 7
    %v1590 = vadd.s32 %v1589, 56
    %1591 = vset.pattern.permute.xlu0 %v1590
    %1592 = vperm.xlu0 %1591, %v1545
    %v1593 = vpop.permute.xlu0 %1592
    %v1594 = vperm.slane %v160, 5
    %v1595 = vlaneseq
    %v1596 = vshrl.u32 %v1595, 7
    %1598 = vset.pattern.permute.xlu0 %v1596
    %1599 = vperm.xlu0 %1598, %v1594
    %v1600 = vpop.permute.xlu0 %1599
    %v1601 = vlaneseq
    %v1602 = vshrl.u32 %v1601, 7
    %v1603 = vadd.s32 %v1602, 8
    %1604 = vset.pattern.permute.xlu0 %v1603
    %1605 = vperm.xlu0 %1604, %v1594
    %v1606 = vpop.permute.xlu0 %1605
    %v1607 = vlaneseq
    %v1608 = vshrl.u32 %v1607, 7
    %v1609 = vadd.s32 %v1608, 16
    %1610 = vset.pattern.permute.xlu0 %v1609
    %1611 = vperm.xlu0 %1610, %v1594
    %v1612 = vpop.permute.xlu0 %1611
    %v1613 = vlaneseq
    %v1614 = vshrl.u32 %v1613, 7
    %v1615 = vadd.s32 %v1614, 24
    %1616 = vset.pattern.permute.xlu0 %v1615
    %1617 = vperm.xlu0 %1616, %v1594
    %v1618 = vpop.permute.xlu0 %1617
    %v1619 = vlaneseq
    %v1620 = vshrl.u32 %v1619, 7
    %v1621 = vadd.s32 %v1620, 32
    %1622 = vset.pattern.permute.xlu0 %v1621
    %1623 = vperm.xlu0 %1622, %v1594
    %v1624 = vpop.permute.xlu0 %1623
    %v1625 = vlaneseq
    %v1626 = vshrl.u32 %v1625, 7
    %v1627 = vadd.s32 %v1626, 40
    %1628 = vset.pattern.permute.xlu0 %v1627
    %1629 = vperm.xlu0 %1628, %v1594
    %v1630 = vpop.permute.xlu0 %1629
    %v1631 = vlaneseq
    %v1632 = vshrl.u32 %v1631, 7
    %v1633 = vadd.s32 %v1632, 48
    %1634 = vset.pattern.permute.xlu0 %v1633
    %1635 = vperm.xlu0 %1634, %v1594
    %v1636 = vpop.permute.xlu0 %1635
    %v1637 = vlaneseq
    %v1638 = vshrl.u32 %v1637, 7
    %v1639 = vadd.s32 %v1638, 56
    %1640 = vset.pattern.permute.xlu0 %v1639
    %1641 = vperm.xlu0 %1640, %v1594
    %v1642 = vpop.permute.xlu0 %1641
    %v1643 = vperm.slane %v160, 6
    %v1644 = vlaneseq
    %v1645 = vshrl.u32 %v1644, 7
    %1647 = vset.pattern.permute.xlu0 %v1645
    %1648 = vperm.xlu0 %1647, %v1643
    %v1649 = vpop.permute.xlu0 %1648
    %v1650 = vlaneseq
    %v1651 = vshrl.u32 %v1650, 7
    %v1652 = vadd.s32 %v1651, 8
    %1653 = vset.pattern.permute.xlu0 %v1652
    %1654 = vperm.xlu0 %1653, %v1643
    %v1655 = vpop.permute.xlu0 %1654
    %v1656 = vlaneseq
    %v1657 = vshrl.u32 %v1656, 7
    %v1658 = vadd.s32 %v1657, 16
    %1659 = vset.pattern.permute.xlu0 %v1658
    %1660 = vperm.xlu0 %1659, %v1643
    %v1661 = vpop.permute.xlu0 %1660
    %v1662 = vlaneseq
    %v1663 = vshrl.u32 %v1662, 7
    %v1664 = vadd.s32 %v1663, 24
    %1665 = vset.pattern.permute.xlu0 %v1664
    %1666 = vperm.xlu0 %1665, %v1643
    %v1667 = vpop.permute.xlu0 %1666
    %v1668 = vlaneseq
    %v1669 = vshrl.u32 %v1668, 7
    %v1670 = vadd.s32 %v1669, 32
    %1671 = vset.pattern.permute.xlu0 %v1670
    %1672 = vperm.xlu0 %1671, %v1643
    %v1673 = vpop.permute.xlu0 %1672
    %v1674 = vlaneseq
    %v1675 = vshrl.u32 %v1674, 7
    %v1676 = vadd.s32 %v1675, 40
    %1677 = vset.pattern.permute.xlu0 %v1676
    %1678 = vperm.xlu0 %1677, %v1643
    %v1679 = vpop.permute.xlu0 %1678
    %v1680 = vlaneseq
    %v1681 = vshrl.u32 %v1680, 7
    %v1682 = vadd.s32 %v1681, 48
    %1683 = vset.pattern.permute.xlu0 %v1682
    %1684 = vperm.xlu0 %1683, %v1643
    %v1685 = vpop.permute.xlu0 %1684
    %v1686 = vlaneseq
    %v1687 = vshrl.u32 %v1686, 7
    %v1688 = vadd.s32 %v1687, 56
    %1689 = vset.pattern.permute.xlu0 %v1688
    %1690 = vperm.xlu0 %1689, %v1643
    %v1691 = vpop.permute.xlu0 %1690
    %v1692 = vperm.slane %v160, 7
    %v1693 = vlaneseq
    %v1694 = vshrl.u32 %v1693, 7
    %1696 = vset.pattern.permute.xlu0 %v1694
    %1697 = vperm.xlu0 %1696, %v1692
    %v1698 = vpop.permute.xlu0 %1697
    %v1699 = vlaneseq
    %v1700 = vshrl.u32 %v1699, 7
    %v1701 = vadd.s32 %v1700, 8
    %1702 = vset.pattern.permute.xlu0 %v1701
    %1703 = vperm.xlu0 %1702, %v1692
    %v1704 = vpop.permute.xlu0 %1703
    %v1705 = vlaneseq
    %v1706 = vshrl.u32 %v1705, 7
    %v1707 = vadd.s32 %v1706, 16
    %1708 = vset.pattern.permute.xlu0 %v1707
    %1709 = vperm.xlu0 %1708, %v1692
    %v1710 = vpop.permute.xlu0 %1709
    %v1711 = vlaneseq
    %v1712 = vshrl.u32 %v1711, 7
    %v1713 = vadd.s32 %v1712, 24
    %1714 = vset.pattern.permute.xlu0 %v1713
    %1715 = vperm.xlu0 %1714, %v1692
    %v1716 = vpop.permute.xlu0 %1715
    %v1717 = vlaneseq
    %v1718 = vshrl.u32 %v1717, 7
    %v1719 = vadd.s32 %v1718, 32
    %1720 = vset.pattern.permute.xlu0 %v1719
    %1721 = vperm.xlu0 %1720, %v1692
    %v1722 = vpop.permute.xlu0 %1721
    %v1723 = vlaneseq
    %v1724 = vshrl.u32 %v1723, 7
    %v1725 = vadd.s32 %v1724, 40
    %1726 = vset.pattern.permute.xlu0 %v1725
    %1727 = vperm.xlu0 %1726, %v1692
    %v1728 = vpop.permute.xlu0 %1727
    %v1729 = vlaneseq
    %v1730 = vshrl.u32 %v1729, 7
    %v1731 = vadd.s32 %v1730, 48
    %1732 = vset.pattern.permute.xlu0 %v1731
    %1733 = vperm.xlu0 %1732, %v1692
    %v1734 = vpop.permute.xlu0 %1733
    %v1735 = vlaneseq
    %v1736 = vshrl.u32 %v1735, 7
    %v1737 = vadd.s32 %v1736, 56
    %1738 = vset.pattern.permute.xlu0 %v1737
    %1739 = vperm.xlu0 %1738, %v1692
    %v1740 = vpop.permute.xlu0 %1739
    %v1741 = vperm.slane %v163, 0
    %v1742 = vlaneseq
    %v1743 = vshrl.u32 %v1742, 7
    %1745 = vset.pattern.permute.xlu0 %v1743
    %1746 = vperm.xlu0 %1745, %v1741
    %v1747 = vpop.permute.xlu0 %1746
    %v1748 = vlaneseq
    %v1749 = vshrl.u32 %v1748, 7
    %v1750 = vadd.s32 %v1749, 8
    %1751 = vset.pattern.permute.xlu0 %v1750
    %1752 = vperm.xlu0 %1751, %v1741
    %v1753 = vpop.permute.xlu0 %1752
    %v1754 = vlaneseq
    %v1755 = vshrl.u32 %v1754, 7
    %v1756 = vadd.s32 %v1755, 16
    %1757 = vset.pattern.permute.xlu0 %v1756
    %1758 = vperm.xlu0 %1757, %v1741
    %v1759 = vpop.permute.xlu0 %1758
    %v1760 = vlaneseq
    %v1761 = vshrl.u32 %v1760, 7
    %v1762 = vadd.s32 %v1761, 24
    %1763 = vset.pattern.permute.xlu0 %v1762
    %1764 = vperm.xlu0 %1763, %v1741
    %v1765 = vpop.permute.xlu0 %1764
    %v1766 = vlaneseq
    %v1767 = vshrl.u32 %v1766, 7
    %v1768 = vadd.s32 %v1767, 32
    %1769 = vset.pattern.permute.xlu0 %v1768
    %1770 = vperm.xlu0 %1769, %v1741
    %v1771 = vpop.permute.xlu0 %1770
    %v1772 = vlaneseq
    %v1773 = vshrl.u32 %v1772, 7
    %v1774 = vadd.s32 %v1773, 40
    %1775 = vset.pattern.permute.xlu0 %v1774
    %1776 = vperm.xlu0 %1775, %v1741
    %v1777 = vpop.permute.xlu0 %1776
    %v1778 = vlaneseq
    %v1779 = vshrl.u32 %v1778, 7
    %v1780 = vadd.s32 %v1779, 48
    %1781 = vset.pattern.permute.xlu0 %v1780
    %1782 = vperm.xlu0 %1781, %v1741
    %v1783 = vpop.permute.xlu0 %1782
    %v1784 = vlaneseq
    %v1785 = vshrl.u32 %v1784, 7
    %v1786 = vadd.s32 %v1785, 56
    %1787 = vset.pattern.permute.xlu0 %v1786
    %1788 = vperm.xlu0 %1787, %v1741
    %v1789 = vpop.permute.xlu0 %1788
    %v1790 = vperm.slane %v163, 1
    %v1791 = vlaneseq
    %v1792 = vshrl.u32 %v1791, 7
    %1794 = vset.pattern.permute.xlu0 %v1792
    %1795 = vperm.xlu0 %1794, %v1790
    %v1796 = vpop.permute.xlu0 %1795
    %v1797 = vlaneseq
    %v1798 = vshrl.u32 %v1797, 7
    %v1799 = vadd.s32 %v1798, 8
    %1800 = vset.pattern.permute.xlu0 %v1799
    %1801 = vperm.xlu0 %1800, %v1790
    %v1802 = vpop.permute.xlu0 %1801
    %v1803 = vlaneseq
    %v1804 = vshrl.u32 %v1803, 7
    %v1805 = vadd.s32 %v1804, 16
    %1806 = vset.pattern.permute.xlu0 %v1805
    %1807 = vperm.xlu0 %1806, %v1790
    %v1808 = vpop.permute.xlu0 %1807
    %v1809 = vlaneseq
    %v1810 = vshrl.u32 %v1809, 7
    %v1811 = vadd.s32 %v1810, 24
    %1812 = vset.pattern.permute.xlu0 %v1811
    %1813 = vperm.xlu0 %1812, %v1790
    %v1814 = vpop.permute.xlu0 %1813
    %v1815 = vlaneseq
    %v1816 = vshrl.u32 %v1815, 7
    %v1817 = vadd.s32 %v1816, 32
    %1818 = vset.pattern.permute.xlu0 %v1817
    %1819 = vperm.xlu0 %1818, %v1790
    %v1820 = vpop.permute.xlu0 %1819
    %v1821 = vlaneseq
    %v1822 = vshrl.u32 %v1821, 7
    %v1823 = vadd.s32 %v1822, 40
    %1824 = vset.pattern.permute.xlu0 %v1823
    %1825 = vperm.xlu0 %1824, %v1790
    %v1826 = vpop.permute.xlu0 %1825
    %v1827 = vlaneseq
    %v1828 = vshrl.u32 %v1827, 7
    %v1829 = vadd.s32 %v1828, 48
    %1830 = vset.pattern.permute.xlu0 %v1829
    %1831 = vperm.xlu0 %1830, %v1790
    %v1832 = vpop.permute.xlu0 %1831
    %v1833 = vlaneseq
    %v1834 = vshrl.u32 %v1833, 7
    %v1835 = vadd.s32 %v1834, 56
    %1836 = vset.pattern.permute.xlu0 %v1835
    %1837 = vperm.xlu0 %1836, %v1790
    %v1838 = vpop.permute.xlu0 %1837
    %v1839 = vperm.slane %v163, 2
    %v1840 = vlaneseq
    %v1841 = vshrl.u32 %v1840, 7
    %1843 = vset.pattern.permute.xlu0 %v1841
    %1844 = vperm.xlu0 %1843, %v1839
    %v1845 = vpop.permute.xlu0 %1844
    %v1846 = vlaneseq
    %v1847 = vshrl.u32 %v1846, 7
    %v1848 = vadd.s32 %v1847, 8
    %1849 = vset.pattern.permute.xlu0 %v1848
    %1850 = vperm.xlu0 %1849, %v1839
    %v1851 = vpop.permute.xlu0 %1850
    %v1852 = vlaneseq
    %v1853 = vshrl.u32 %v1852, 7
    %v1854 = vadd.s32 %v1853, 16
    %1855 = vset.pattern.permute.xlu0 %v1854
    %1856 = vperm.xlu0 %1855, %v1839
    %v1857 = vpop.permute.xlu0 %1856
    %v1858 = vlaneseq
    %v1859 = vshrl.u32 %v1858, 7
    %v1860 = vadd.s32 %v1859, 24
    %1861 = vset.pattern.permute.xlu0 %v1860
    %1862 = vperm.xlu0 %1861, %v1839
    %v1863 = vpop.permute.xlu0 %1862
    %v1864 = vlaneseq
    %v1865 = vshrl.u32 %v1864, 7
    %v1866 = vadd.s32 %v1865, 32
    %1867 = vset.pattern.permute.xlu0 %v1866
    %1868 = vperm.xlu0 %1867, %v1839
    %v1869 = vpop.permute.xlu0 %1868
    %v1870 = vlaneseq
    %v1871 = vshrl.u32 %v1870, 7
    %v1872 = vadd.s32 %v1871, 40
    %1873 = vset.pattern.permute.xlu0 %v1872
    %1874 = vperm.xlu0 %1873, %v1839
    %v1875 = vpop.permute.xlu0 %1874
    %v1876 = vlaneseq
    %v1877 = vshrl.u32 %v1876, 7
    %v1878 = vadd.s32 %v1877, 48
    %1879 = vset.pattern.permute.xlu0 %v1878
    %1880 = vperm.xlu0 %1879, %v1839
    %v1881 = vpop.permute.xlu0 %1880
    %v1882 = vlaneseq
    %v1883 = vshrl.u32 %v1882, 7
    %v1884 = vadd.s32 %v1883, 56
    %1885 = vset.pattern.permute.xlu0 %v1884
    %1886 = vperm.xlu0 %1885, %v1839
    %v1887 = vpop.permute.xlu0 %1886
    %v1888 = vperm.slane %v163, 3
    %v1889 = vlaneseq
    %v1890 = vshrl.u32 %v1889, 7
    %1892 = vset.pattern.permute.xlu0 %v1890
    %1893 = vperm.xlu0 %1892, %v1888
    %v1894 = vpop.permute.xlu0 %1893
    %v1895 = vlaneseq
    %v1896 = vshrl.u32 %v1895, 7
    %v1897 = vadd.s32 %v1896, 8
    %1898 = vset.pattern.permute.xlu0 %v1897
    %1899 = vperm.xlu0 %1898, %v1888
    %v1900 = vpop.permute.xlu0 %1899
    %v1901 = vlaneseq
    %v1902 = vshrl.u32 %v1901, 7
    %v1903 = vadd.s32 %v1902, 16
    %1904 = vset.pattern.permute.xlu0 %v1903
    %1905 = vperm.xlu0 %1904, %v1888
    %v1906 = vpop.permute.xlu0 %1905
    %v1907 = vlaneseq
    %v1908 = vshrl.u32 %v1907, 7
    %v1909 = vadd.s32 %v1908, 24
    %1910 = vset.pattern.permute.xlu0 %v1909
    %1911 = vperm.xlu0 %1910, %v1888
    %v1912 = vpop.permute.xlu0 %1911
    %v1913 = vlaneseq
    %v1914 = vshrl.u32 %v1913, 7
    %v1915 = vadd.s32 %v1914, 32
    %1916 = vset.pattern.permute.xlu0 %v1915
    %1917 = vperm.xlu0 %1916, %v1888
    %v1918 = vpop.permute.xlu0 %1917
    %v1919 = vlaneseq
    %v1920 = vshrl.u32 %v1919, 7
    %v1921 = vadd.s32 %v1920, 40
    %1922 = vset.pattern.permute.xlu0 %v1921
    %1923 = vperm.xlu0 %1922, %v1888
    %v1924 = vpop.permute.xlu0 %1923
    %v1925 = vlaneseq
    %v1926 = vshrl.u32 %v1925, 7
    %v1927 = vadd.s32 %v1926, 48
    %1928 = vset.pattern.permute.xlu0 %v1927
    %1929 = vperm.xlu0 %1928, %v1888
    %v1930 = vpop.permute.xlu0 %1929
    %v1931 = vlaneseq
    %v1932 = vshrl.u32 %v1931, 7
    %v1933 = vadd.s32 %v1932, 56
    %1934 = vset.pattern.permute.xlu0 %v1933
    %1935 = vperm.xlu0 %1934, %v1888
    %v1936 = vpop.permute.xlu0 %1935
    %v1937 = vperm.slane %v163, 4
    %v1938 = vlaneseq
    %v1939 = vshrl.u32 %v1938, 7
    %1941 = vset.pattern.permute.xlu0 %v1939
    %1942 = vperm.xlu0 %1941, %v1937
    %v1943 = vpop.permute.xlu0 %1942
    %v1944 = vlaneseq
    %v1945 = vshrl.u32 %v1944, 7
    %v1946 = vadd.s32 %v1945, 8
    %1947 = vset.pattern.permute.xlu0 %v1946
    %1948 = vperm.xlu0 %1947, %v1937
    %v1949 = vpop.permute.xlu0 %1948
    %v1950 = vlaneseq
    %v1951 = vshrl.u32 %v1950, 7
    %v1952 = vadd.s32 %v1951, 16
    %1953 = vset.pattern.permute.xlu0 %v1952
    %1954 = vperm.xlu0 %1953, %v1937
    %v1955 = vpop.permute.xlu0 %1954
    %v1956 = vlaneseq
    %v1957 = vshrl.u32 %v1956, 7
    %v1958 = vadd.s32 %v1957, 24
    %1959 = vset.pattern.permute.xlu0 %v1958
    %1960 = vperm.xlu0 %1959, %v1937
    %v1961 = vpop.permute.xlu0 %1960
    %v1962 = vlaneseq
    %v1963 = vshrl.u32 %v1962, 7
    %v1964 = vadd.s32 %v1963, 32
    %1965 = vset.pattern.permute.xlu0 %v1964
    %1966 = vperm.xlu0 %1965, %v1937
    %v1967 = vpop.permute.xlu0 %1966
    %v1968 = vlaneseq
    %v1969 = vshrl.u32 %v1968, 7
    %v1970 = vadd.s32 %v1969, 40
    %1971 = vset.pattern.permute.xlu0 %v1970
    %1972 = vperm.xlu0 %1971, %v1937
    %v1973 = vpop.permute.xlu0 %1972
    %v1974 = vlaneseq
    %v1975 = vshrl.u32 %v1974, 7
    %v1976 = vadd.s32 %v1975, 48
    %1977 = vset.pattern.permute.xlu0 %v1976
    %1978 = vperm.xlu0 %1977, %v1937
    %v1979 = vpop.permute.xlu0 %1978
    %v1980 = vlaneseq
    %v1981 = vshrl.u32 %v1980, 7
    %v1982 = vadd.s32 %v1981, 56
    %1983 = vset.pattern.permute.xlu0 %v1982
    %1984 = vperm.xlu0 %1983, %v1937
    %v1985 = vpop.permute.xlu0 %1984
    %v1986 = vperm.slane %v163, 5
    %v1987 = vlaneseq
    %v1988 = vshrl.u32 %v1987, 7
    %1990 = vset.pattern.permute.xlu0 %v1988
    %1991 = vperm.xlu0 %1990, %v1986
    %v1992 = vpop.permute.xlu0 %1991
    %v1993 = vlaneseq
    %v1994 = vshrl.u32 %v1993, 7
    %v1995 = vadd.s32 %v1994, 8
    %1996 = vset.pattern.permute.xlu0 %v1995
    %1997 = vperm.xlu0 %1996, %v1986
    %v1998 = vpop.permute.xlu0 %1997
    %v1999 = vlaneseq
    %v2000 = vshrl.u32 %v1999, 7
    %v2001 = vadd.s32 %v2000, 16
    %2002 = vset.pattern.permute.xlu0 %v2001
    %2003 = vperm.xlu0 %2002, %v1986
    %v2004 = vpop.permute.xlu0 %2003
    %v2005 = vlaneseq
    %v2006 = vshrl.u32 %v2005, 7
    %v2007 = vadd.s32 %v2006, 24
    %2008 = vset.pattern.permute.xlu0 %v2007
    %2009 = vperm.xlu0 %2008, %v1986
    %v2010 = vpop.permute.xlu0 %2009
    %v2011 = vlaneseq
    %v2012 = vshrl.u32 %v2011, 7
    %v2013 = vadd.s32 %v2012, 32
    %2014 = vset.pattern.permute.xlu0 %v2013
    %2015 = vperm.xlu0 %2014, %v1986
    %v2016 = vpop.permute.xlu0 %2015
    %v2017 = vlaneseq
    %v2018 = vshrl.u32 %v2017, 7
    %v2019 = vadd.s32 %v2018, 40
    %2020 = vset.pattern.permute.xlu0 %v2019
    %2021 = vperm.xlu0 %2020, %v1986
    %v2022 = vpop.permute.xlu0 %2021
    %v2023 = vlaneseq
    %v2024 = vshrl.u32 %v2023, 7
    %v2025 = vadd.s32 %v2024, 48
    %2026 = vset.pattern.permute.xlu0 %v2025
    %2027 = vperm.xlu0 %2026, %v1986
    %v2028 = vpop.permute.xlu0 %2027
    %v2029 = vlaneseq
    %v2030 = vshrl.u32 %v2029, 7
    %v2031 = vadd.s32 %v2030, 56
    %2032 = vset.pattern.permute.xlu0 %v2031
    %2033 = vperm.xlu0 %2032, %v1986
    %v2034 = vpop.permute.xlu0 %2033
    %v2035 = vperm.slane %v163, 6
    %v2036 = vlaneseq
    %v2037 = vshrl.u32 %v2036, 7
    %2039 = vset.pattern.permute.xlu0 %v2037
    %2040 = vperm.xlu0 %2039, %v2035
    %v2041 = vpop.permute.xlu0 %2040
    %v2042 = vlaneseq
    %v2043 = vshrl.u32 %v2042, 7
    %v2044 = vadd.s32 %v2043, 8
    %2045 = vset.pattern.permute.xlu0 %v2044
    %2046 = vperm.xlu0 %2045, %v2035
    %v2047 = vpop.permute.xlu0 %2046
    %v2048 = vlaneseq
    %v2049 = vshrl.u32 %v2048, 7
    %v2050 = vadd.s32 %v2049, 16
    %2051 = vset.pattern.permute.xlu0 %v2050
    %2052 = vperm.xlu0 %2051, %v2035
    %v2053 = vpop.permute.xlu0 %2052
    %v2054 = vlaneseq
    %v2055 = vshrl.u32 %v2054, 7
    %v2056 = vadd.s32 %v2055, 24
    %2057 = vset.pattern.permute.xlu0 %v2056
    %2058 = vperm.xlu0 %2057, %v2035
    %v2059 = vpop.permute.xlu0 %2058
    %v2060 = vlaneseq
    %v2061 = vshrl.u32 %v2060, 7
    %v2062 = vadd.s32 %v2061, 32
    %2063 = vset.pattern.permute.xlu0 %v2062
    %2064 = vperm.xlu0 %2063, %v2035
    %v2065 = vpop.permute.xlu0 %2064
    %v2066 = vlaneseq
    %v2067 = vshrl.u32 %v2066, 7
    %v2068 = vadd.s32 %v2067, 40
    %2069 = vset.pattern.permute.xlu0 %v2068
    %2070 = vperm.xlu0 %2069, %v2035
    %v2071 = vpop.permute.xlu0 %2070
    %v2072 = vlaneseq
    %v2073 = vshrl.u32 %v2072, 7
    %v2074 = vadd.s32 %v2073, 48
    %2075 = vset.pattern.permute.xlu0 %v2074
    %2076 = vperm.xlu0 %2075, %v2035
    %v2077 = vpop.permute.xlu0 %2076
    %v2078 = vlaneseq
    %v2079 = vshrl.u32 %v2078, 7
    %v2080 = vadd.s32 %v2079, 56
    %2081 = vset.pattern.permute.xlu0 %v2080
    %2082 = vperm.xlu0 %2081, %v2035
    %v2083 = vpop.permute.xlu0 %2082
    %v2084 = vperm.slane %v163, 7
    %v2085 = vlaneseq
    %v2086 = vshrl.u32 %v2085, 7
    %2088 = vset.pattern.permute.xlu0 %v2086
    %2089 = vperm.xlu0 %2088, %v2084
    %v2090 = vpop.permute.xlu0 %2089
    %v2091 = vlaneseq
    %v2092 = vshrl.u32 %v2091, 7
    %v2093 = vadd.s32 %v2092, 8
    %2094 = vset.pattern.permute.xlu0 %v2093
    %2095 = vperm.xlu0 %2094, %v2084
    %v2096 = vpop.permute.xlu0 %2095
    %v2097 = vlaneseq
    %v2098 = vshrl.u32 %v2097, 7
    %v2099 = vadd.s32 %v2098, 16
    %2100 = vset.pattern.permute.xlu0 %v2099
    %2101 = vperm.xlu0 %2100, %v2084
    %v2102 = vpop.permute.xlu0 %2101
    %v2103 = vlaneseq
    %v2104 = vshrl.u32 %v2103, 7
    %v2105 = vadd.s32 %v2104, 24
    %2106 = vset.pattern.permute.xlu0 %v2105
    %2107 = vperm.xlu0 %2106, %v2084
    %v2108 = vpop.permute.xlu0 %2107
    %v2109 = vlaneseq
    %v2110 = vshrl.u32 %v2109, 7
    %v2111 = vadd.s32 %v2110, 32
    %2112 = vset.pattern.permute.xlu0 %v2111
    %2113 = vperm.xlu0 %2112, %v2084
    %v2114 = vpop.permute.xlu0 %2113
    %v2115 = vlaneseq
    %v2116 = vshrl.u32 %v2115, 7
    %v2117 = vadd.s32 %v2116, 40
    %2118 = vset.pattern.permute.xlu0 %v2117
    %2119 = vperm.xlu0 %2118, %v2084
    %v2120 = vpop.permute.xlu0 %2119
    %v2121 = vlaneseq
    %v2122 = vshrl.u32 %v2121, 7
    %v2123 = vadd.s32 %v2122, 48
    %2124 = vset.pattern.permute.xlu0 %v2123
    %2125 = vperm.xlu0 %2124, %v2084
    %v2126 = vpop.permute.xlu0 %2125
    %v2127 = vlaneseq
    %v2128 = vshrl.u32 %v2127, 7
    %v2129 = vadd.s32 %v2128, 56
    %2130 = vset.pattern.permute.xlu0 %v2129
    %2131 = vperm.xlu0 %2130, %v2084
    %v2132 = vpop.permute.xlu0 %2131
    %v2133 = vmul.f32 %v1355, %v165
    %v2134 = vmul.f32 %v1361, %v166
    %v2135 = vmul.f32 %v1367, %v167
    %v2136 = vmul.f32 %v1373, %v168
    %v2137 = vmul.f32 %v1379, %v169
    %v2138 = vmul.f32 %v1385, %v170
    %v2139 = vmul.f32 %v1391, %v171
    %v2140 = vmul.f32 %v1397, %v172
    %v2141 = vmul.f32 %v1404, %v173
    %v2142 = vmul.f32 %v1410, %v174
    %v2143 = vmul.f32 %v1416, %v175
    %v2144 = vmul.f32 %v1422, %v176
    %v2145 = vmul.f32 %v1428, %v177
    %v2146 = vmul.f32 %v1434, %v178
    %v2147 = vmul.f32 %v1440, %v179
    %v2148 = vmul.f32 %v1446, %v180
    %v2149 = vmul.f32 %v1453, %v181
    %v2150 = vmul.f32 %v1459, %v182
    %v2151 = vmul.f32 %v1465, %v183
    %v2152 = vmul.f32 %v1471, %v184
    %v2153 = vmul.f32 %v1477, %v185
    %v2154 = vmul.f32 %v1483, %v186
    %v2155 = vmul.f32 %v1489, %v187
    %v2156 = vmul.f32 %v1495, %v188
    %v2157 = vmul.f32 %v1502, %v189
    %v2158 = vmul.f32 %v1508, %v190
    %v2159 = vmul.f32 %v1514, %v191
    %v2160 = vmul.f32 %v1520, %v192
    %v2161 = vmul.f32 %v1526, %v193
    %v2162 = vmul.f32 %v1532, %v194
    %v2163 = vmul.f32 %v1538, %v195
    %v2164 = vmul.f32 %v1544, %v196
    %v2165 = vmul.f32 %v1551, %v197
    %v2166 = vmul.f32 %v1557, %v198
    %v2167 = vmul.f32 %v1563, %v199
    %v2168 = vmul.f32 %v1569, %v200
    %v2169 = vmul.f32 %v1575, %v201
    %v2170 = vmul.f32 %v1581, %v202
    %v2171 = vmul.f32 %v1587, %v203
    %v2172 = vmul.f32 %v1593, %v204
    %v2173 = vmul.f32 %v1600, %v205
    %v2174 = vmul.f32 %v1606, %v206
    %v2175 = vmul.f32 %v1612, %v207
    %v2176 = vmul.f32 %v1618, %v208
    %v2177 = vmul.f32 %v1624, %v209
    %v2178 = vmul.f32 %v1630, %v210
    %v2179 = vmul.f32 %v1636, %v211
    %v2180 = vmul.f32 %v1642, %v212
    %v2181 = vmul.f32 %v1649, %v213
    %v2182 = vmul.f32 %v1655, %v214
    %v2183 = vmul.f32 %v1661, %v215
    %v2184 = vmul.f32 %v1667, %v216
    %v2185 = vmul.f32 %v1673, %v217
    %v2186 = vmul.f32 %v1679, %v218
    %v2187 = vmul.f32 %v1685, %v219
    %v2188 = vmul.f32 %v1691, %v220
    %v2189 = vmul.f32 %v1698, %v221
    %v2190 = vmul.f32 %v1704, %v222
    %v2191 = vmul.f32 %v1710, %v223
    %v2192 = vmul.f32 %v1716, %v224
    %v2193 = vmul.f32 %v1722, %v225
    %v2194 = vmul.f32 %v1728, %v226
    %v2195 = vmul.f32 %v1734, %v227
    %v2196 = vmul.f32 %v1740, %v228
    %v2197 = vmul.f32 %v1747, %v165
    %v2198 = vmul.f32 %v1753, %v166
    %v2199 = vmul.f32 %v1759, %v167
    %v2200 = vmul.f32 %v1765, %v168
    %v2201 = vmul.f32 %v1771, %v169
    %v2202 = vmul.f32 %v1777, %v170
    %v2203 = vmul.f32 %v1783, %v171
    %v2204 = vmul.f32 %v1789, %v172
    %v2205 = vmul.f32 %v1796, %v173
    %v2206 = vmul.f32 %v1802, %v174
    %v2207 = vmul.f32 %v1808, %v175
    %v2208 = vmul.f32 %v1814, %v176
    %v2209 = vmul.f32 %v1820, %v177
    %v2210 = vmul.f32 %v1826, %v178
    %v2211 = vmul.f32 %v1832, %v179
    %v2212 = vmul.f32 %v1838, %v180
    %v2213 = vmul.f32 %v1845, %v181
    %v2214 = vmul.f32 %v1851, %v182
    %v2215 = vmul.f32 %v1857, %v183
    %v2216 = vmul.f32 %v1863, %v184
    %v2217 = vmul.f32 %v1869, %v185
    %v2218 = vmul.f32 %v1875, %v186
    %v2219 = vmul.f32 %v1881, %v187
    %v2220 = vmul.f32 %v1887, %v188
    %v2221 = vmul.f32 %v1894, %v189
    %v2222 = vmul.f32 %v1900, %v190
    %v2223 = vmul.f32 %v1906, %v191
    %v2224 = vmul.f32 %v1912, %v192
    %v2225 = vmul.f32 %v1918, %v193
    %v2226 = vmul.f32 %v1924, %v194
    %v2227 = vmul.f32 %v1930, %v195
    %v2228 = vmul.f32 %v1936, %v196
    %v2229 = vmul.f32 %v1943, %v197
    %v2230 = vmul.f32 %v1949, %v198
    %v2231 = vmul.f32 %v1955, %v199
    %v2232 = vmul.f32 %v1961, %v200
    %v2233 = vmul.f32 %v1967, %v201
    %v2234 = vmul.f32 %v1973, %v202
    %v2235 = vmul.f32 %v1979, %v203
    %v2236 = vmul.f32 %v1985, %v204
    %v2237 = vmul.f32 %v1992, %v205
    %v2238 = vmul.f32 %v1998, %v206
    %v2239 = vmul.f32 %v2004, %v207
    %v2240 = vmul.f32 %v2010, %v208
    %v2241 = vmul.f32 %v2016, %v209
    %v2242 = vmul.f32 %v2022, %v210
    %v2243 = vmul.f32 %v2028, %v211
    %v2244 = vmul.f32 %v2034, %v212
    %v2245 = vmul.f32 %v2041, %v213
    %v2246 = vmul.f32 %v2047, %v214
    %v2247 = vmul.f32 %v2053, %v215
    %v2248 = vmul.f32 %v2059, %v216
    %v2249 = vmul.f32 %v2065, %v217
    %v2250 = vmul.f32 %v2071, %v218
    %v2251 = vmul.f32 %v2077, %v219
    %v2252 = vmul.f32 %v2083, %v220
    %v2253 = vmul.f32 %v2090, %v221
    %v2254 = vmul.f32 %v2096, %v222
    %v2255 = vmul.f32 %v2102, %v223
    %v2256 = vmul.f32 %v2108, %v224
    %v2257 = vmul.f32 %v2114, %v225
    %v2258 = vmul.f32 %v2120, %v226
    %v2259 = vmul.f32 %v2126, %v227
    %v2260 = vmul.f32 %v2132, %v228
    %v2261 = vadd.f32 %v2133, %v2134
    %v2262 = vadd.f32 %v2261, %v2135
    %v2263 = vadd.f32 %v2262, %v2136
    %v2264 = vadd.f32 %v2263, %v2137
    %v2265 = vadd.f32 %v2264, %v2138
    %v2266 = vadd.f32 %v2265, %v2139
    %v2267 = vadd.f32 %v2266, %v2140
    %v2268 = vrot.slane %v2267, 4
    %v2269 = vadd.f32 %v2267, %v2268
    %v2270 = vrot.slane %v2269, 2
    %v2271 = vadd.f32 %v2269, %v2270
    %v2272 = vrot.slane %v2271, 1
    %v2273 = vadd.f32 %v2271, %v2272
    %v2274 = vadd.f32 %v2141, %v2142
    %v2275 = vadd.f32 %v2274, %v2143
    %v2276 = vadd.f32 %v2275, %v2144
    %v2277 = vadd.f32 %v2276, %v2145
    %v2278 = vadd.f32 %v2277, %v2146
    %v2279 = vadd.f32 %v2278, %v2147
    %v2280 = vadd.f32 %v2279, %v2148
    %v2281 = vrot.slane %v2280, 4
    %v2282 = vadd.f32 %v2280, %v2281
    %v2283 = vrot.slane %v2282, 2
    %v2284 = vadd.f32 %v2282, %v2283
    %v2285 = vrot.slane %v2284, 1
    %v2286 = vadd.f32 %v2284, %v2285
    %v2287 = vadd.f32 %v2149, %v2150
    %v2288 = vadd.f32 %v2287, %v2151
    %v2289 = vadd.f32 %v2288, %v2152
    %v2290 = vadd.f32 %v2289, %v2153
    %v2291 = vadd.f32 %v2290, %v2154
    %v2292 = vadd.f32 %v2291, %v2155
    %v2293 = vadd.f32 %v2292, %v2156
    %v2294 = vrot.slane %v2293, 4
    %v2295 = vadd.f32 %v2293, %v2294
    %v2296 = vrot.slane %v2295, 2
    %v2297 = vadd.f32 %v2295, %v2296
    %v2298 = vrot.slane %v2297, 1
    %v2299 = vadd.f32 %v2297, %v2298
    %v2300 = vadd.f32 %v2157, %v2158
    %v2301 = vadd.f32 %v2300, %v2159
    %v2302 = vadd.f32 %v2301, %v2160
    %v2303 = vadd.f32 %v2302, %v2161
    %v2304 = vadd.f32 %v2303, %v2162
    %v2305 = vadd.f32 %v2304, %v2163
    %v2306 = vadd.f32 %v2305, %v2164
    %v2307 = vrot.slane %v2306, 4
    %v2308 = vadd.f32 %v2306, %v2307
    %v2309 = vrot.slane %v2308, 2
    %v2310 = vadd.f32 %v2308, %v2309
    %v2311 = vrot.slane %v2310, 1
    %v2312 = vadd.f32 %v2310, %v2311
    %v2313 = vadd.f32 %v2165, %v2166
    %v2314 = vadd.f32 %v2313, %v2167
    %v2315 = vadd.f32 %v2314, %v2168
    %v2316 = vadd.f32 %v2315, %v2169
    %v2317 = vadd.f32 %v2316, %v2170
    %v2318 = vadd.f32 %v2317, %v2171
    %v2319 = vadd.f32 %v2318, %v2172
    %v2320 = vrot.slane %v2319, 4
    %v2321 = vadd.f32 %v2319, %v2320
    %v2322 = vrot.slane %v2321, 2
    %v2323 = vadd.f32 %v2321, %v2322
    %v2324 = vrot.slane %v2323, 1
    %v2325 = vadd.f32 %v2323, %v2324
    %v2326 = vadd.f32 %v2173, %v2174
    %v2327 = vadd.f32 %v2326, %v2175
    %v2328 = vadd.f32 %v2327, %v2176
    %v2329 = vadd.f32 %v2328, %v2177
    %v2330 = vadd.f32 %v2329, %v2178
    %v2331 = vadd.f32 %v2330, %v2179
    %v2332 = vadd.f32 %v2331, %v2180
    %v2333 = vrot.slane %v2332, 4
    %v2334 = vadd.f32 %v2332, %v2333
    %v2335 = vrot.slane %v2334, 2
    %v2336 = vadd.f32 %v2334, %v2335
    %v2337 = vrot.slane %v2336, 1
    %v2338 = vadd.f32 %v2336, %v2337
    %v2339 = vadd.f32 %v2181, %v2182
    %v2340 = vadd.f32 %v2339, %v2183
    %v2341 = vadd.f32 %v2340, %v2184
    %v2342 = vadd.f32 %v2341, %v2185
    %v2343 = vadd.f32 %v2342, %v2186
    %v2344 = vadd.f32 %v2343, %v2187
    %v2345 = vadd.f32 %v2344, %v2188
    %v2346 = vrot.slane %v2345, 4
    %v2347 = vadd.f32 %v2345, %v2346
    %v2348 = vrot.slane %v2347, 2
    %v2349 = vadd.f32 %v2347, %v2348
    %v2350 = vrot.slane %v2349, 1
    %v2351 = vadd.f32 %v2349, %v2350
    %v2352 = vadd.f32 %v2189, %v2190
    %v2353 = vadd.f32 %v2352, %v2191
    %v2354 = vadd.f32 %v2353, %v2192
    %v2355 = vadd.f32 %v2354, %v2193
    %v2356 = vadd.f32 %v2355, %v2194
    %v2357 = vadd.f32 %v2356, %v2195
    %v2358 = vadd.f32 %v2357, %v2196
    %v2359 = vrot.slane %v2358, 4
    %v2360 = vadd.f32 %v2358, %v2359
    %v2361 = vrot.slane %v2360, 2
    %v2362 = vadd.f32 %v2360, %v2361
    %v2363 = vrot.slane %v2362, 1
    %v2364 = vadd.f32 %v2362, %v2363
    %v2365 = vadd.f32 %v2197, %v2198
    %v2366 = vadd.f32 %v2365, %v2199
    %v2367 = vadd.f32 %v2366, %v2200
    %v2368 = vadd.f32 %v2367, %v2201
    %v2369 = vadd.f32 %v2368, %v2202
    %v2370 = vadd.f32 %v2369, %v2203
    %v2371 = vadd.f32 %v2370, %v2204
    %v2372 = vrot.slane %v2371, 4
    %v2373 = vadd.f32 %v2371, %v2372
    %v2374 = vrot.slane %v2373, 2
    %v2375 = vadd.f32 %v2373, %v2374
    %v2376 = vrot.slane %v2375, 1
    %v2377 = vadd.f32 %v2375, %v2376
    %v2378 = vadd.f32 %v2205, %v2206
    %v2379 = vadd.f32 %v2378, %v2207
    %v2380 = vadd.f32 %v2379, %v2208
    %v2381 = vadd.f32 %v2380, %v2209
    %v2382 = vadd.f32 %v2381, %v2210
    %v2383 = vadd.f32 %v2382, %v2211
    %v2384 = vadd.f32 %v2383, %v2212
    %v2385 = vrot.slane %v2384, 4
    %v2386 = vadd.f32 %v2384, %v2385
    %v2387 = vrot.slane %v2386, 2
    %v2388 = vadd.f32 %v2386, %v2387
    %v2389 = vrot.slane %v2388, 1
    %v2390 = vadd.f32 %v2388, %v2389
    %v2391 = vadd.f32 %v2213, %v2214
    %v2392 = vadd.f32 %v2391, %v2215
    %v2393 = vadd.f32 %v2392, %v2216
    %v2394 = vadd.f32 %v2393, %v2217
    %v2395 = vadd.f32 %v2394, %v2218
    %v2396 = vadd.f32 %v2395, %v2219
    %v2397 = vadd.f32 %v2396, %v2220
    %v2398 = vrot.slane %v2397, 4
    %v2399 = vadd.f32 %v2397, %v2398
    %v2400 = vrot.slane %v2399, 2
    %v2401 = vadd.f32 %v2399, %v2400
    %v2402 = vrot.slane %v2401, 1
    %v2403 = vadd.f32 %v2401, %v2402
    %v2404 = vadd.f32 %v2221, %v2222
    %v2405 = vadd.f32 %v2404, %v2223
    %v2406 = vadd.f32 %v2405, %v2224
    %v2407 = vadd.f32 %v2406, %v2225
    %v2408 = vadd.f32 %v2407, %v2226
    %v2409 = vadd.f32 %v2408, %v2227
    %v2410 = vadd.f32 %v2409, %v2228
    %v2411 = vrot.slane %v2410, 4
    %v2412 = vadd.f32 %v2410, %v2411
    %v2413 = vrot.slane %v2412, 2
    %v2414 = vadd.f32 %v2412, %v2413
    %v2415 = vrot.slane %v2414, 1
    %v2416 = vadd.f32 %v2414, %v2415
    %v2417 = vadd.f32 %v2229, %v2230
    %v2418 = vadd.f32 %v2417, %v2231
    %v2419 = vadd.f32 %v2418, %v2232
    %v2420 = vadd.f32 %v2419, %v2233
    %v2421 = vadd.f32 %v2420, %v2234
    %v2422 = vadd.f32 %v2421, %v2235
    %v2423 = vadd.f32 %v2422, %v2236
    %v2424 = vrot.slane %v2423, 4
    %v2425 = vadd.f32 %v2423, %v2424
    %v2426 = vrot.slane %v2425, 2
    %v2427 = vadd.f32 %v2425, %v2426
    %v2428 = vrot.slane %v2427, 1
    %v2429 = vadd.f32 %v2427, %v2428
    %v2430 = vadd.f32 %v2237, %v2238
    %v2431 = vadd.f32 %v2430, %v2239
    %v2432 = vadd.f32 %v2431, %v2240
    %v2433 = vadd.f32 %v2432, %v2241
    %v2434 = vadd.f32 %v2433, %v2242
    %v2435 = vadd.f32 %v2434, %v2243
    %v2436 = vadd.f32 %v2435, %v2244
    %v2437 = vrot.slane %v2436, 4
    %v2438 = vadd.f32 %v2436, %v2437
    %v2439 = vrot.slane %v2438, 2
    %v2440 = vadd.f32 %v2438, %v2439
    %v2441 = vrot.slane %v2440, 1
    %v2442 = vadd.f32 %v2440, %v2441
    %v2443 = vadd.f32 %v2245, %v2246
    %v2444 = vadd.f32 %v2443, %v2247
    %v2445 = vadd.f32 %v2444, %v2248
    %v2446 = vadd.f32 %v2445, %v2249
    %v2447 = vadd.f32 %v2446, %v2250
    %v2448 = vadd.f32 %v2447, %v2251
    %v2449 = vadd.f32 %v2448, %v2252
    %v2450 = vrot.slane %v2449, 4
    %v2451 = vadd.f32 %v2449, %v2450
    %v2452 = vrot.slane %v2451, 2
    %v2453 = vadd.f32 %v2451, %v2452
    %v2454 = vrot.slane %v2453, 1
    %v2455 = vadd.f32 %v2453, %v2454
    %v2456 = vadd.f32 %v2253, %v2254
    %v2457 = vadd.f32 %v2456, %v2255
    %v2458 = vadd.f32 %v2457, %v2256
    %v2459 = vadd.f32 %v2458, %v2257
    %v2460 = vadd.f32 %v2459, %v2258
    %v2461 = vadd.f32 %v2460, %v2259
    %v2462 = vadd.f32 %v2461, %v2260
    %v2463 = vrot.slane %v2462, 4
    %v2464 = vadd.f32 %v2462, %v2463
    %v2465 = vrot.slane %v2464, 2
    %v2466 = vadd.f32 %v2464, %v2465
    %v2467 = vrot.slane %v2466, 1
    %v2468 = vadd.f32 %v2466, %v2467
    %2485 = vrot.lane.b32.xlu0 %v2273, 64
    %v2486 = vpop.permute.xlu0 %2485
    %2487 = vrot.lane.b32.xlu0 %v2286, 64
    %v2488 = vpop.permute.xlu0 %2487
    %2489 = vrot.lane.b32.xlu0 %v2299, 64
    %v2490 = vpop.permute.xlu0 %2489
    %2491 = vrot.lane.b32.xlu0 %v2312, 64
    %v2492 = vpop.permute.xlu0 %2491
    %2493 = vrot.lane.b32.xlu0 %v2325, 64
    %v2494 = vpop.permute.xlu0 %2493
    %2495 = vrot.lane.b32.xlu0 %v2338, 64
    %v2496 = vpop.permute.xlu0 %2495
    %2497 = vrot.lane.b32.xlu0 %v2351, 64
    %v2498 = vpop.permute.xlu0 %2497
    %2499 = vrot.lane.b32.xlu0 %v2364, 64
    %v2500 = vpop.permute.xlu0 %2499
    %2501 = vrot.lane.b32.xlu0 %v2377, 64
    %v2502 = vpop.permute.xlu0 %2501
    %2503 = vrot.lane.b32.xlu0 %v2390, 64
    %v2504 = vpop.permute.xlu0 %2503
    %2505 = vrot.lane.b32.xlu0 %v2403, 64
    %v2506 = vpop.permute.xlu0 %2505
    %2507 = vrot.lane.b32.xlu0 %v2416, 64
    %v2508 = vpop.permute.xlu0 %2507
    %2509 = vrot.lane.b32.xlu0 %v2429, 64
    %v2510 = vpop.permute.xlu0 %2509
    %2511 = vrot.lane.b32.xlu0 %v2442, 64
    %v2512 = vpop.permute.xlu0 %2511
    %2513 = vrot.lane.b32.xlu0 %v2455, 64
    %v2514 = vpop.permute.xlu0 %2513
    %2515 = vrot.lane.b32.xlu0 %v2468, 64
    %v2516 = vpop.permute.xlu0 %2515
    %v2533 = vsub.f32 %v1153, %v2486
    %v2534 = vsub.f32 %v1166, %v2488
    %v2535 = vsub.f32 %v1179, %v2490
    %v2536 = vsub.f32 %v1192, %v2492
    %v2537 = vsub.f32 %v1205, %v2494
    %v2538 = vsub.f32 %v1218, %v2496
    %v2539 = vsub.f32 %v1231, %v2498
    %v2540 = vsub.f32 %v1244, %v2500
    %v2541 = vsub.f32 %v1257, %v2502
    %v2542 = vsub.f32 %v1270, %v2504
    %v2543 = vsub.f32 %v1283, %v2506
    %v2544 = vsub.f32 %v1296, %v2508
    %v2545 = vsub.f32 %v1309, %v2510
    %v2546 = vsub.f32 %v1322, %v2512
    %v2547 = vsub.f32 %v1335, %v2514
    %v2548 = vsub.f32 %v1348, %v2516
    %v2549 = vadd.f32 %v1153, %v2486
    %v2550 = vadd.f32 %v1166, %v2488
    %v2551 = vadd.f32 %v1179, %v2490
    %v2552 = vadd.f32 %v1192, %v2492
    %v2553 = vadd.f32 %v1205, %v2494
    %v2554 = vadd.f32 %v1218, %v2496
    %v2555 = vadd.f32 %v1231, %v2498
    %v2556 = vadd.f32 %v1244, %v2500
    %v2557 = vadd.f32 %v1257, %v2502
    %v2558 = vadd.f32 %v1270, %v2504
    %v2559 = vadd.f32 %v1283, %v2506
    %v2560 = vadd.f32 %v1296, %v2508
    %v2561 = vadd.f32 %v1309, %v2510
    %v2562 = vadd.f32 %v1322, %v2512
    %v2563 = vadd.f32 %v1335, %v2514
    %v2564 = vadd.f32 %v1348, %v2516
    %v2581 = vrot.slane %v2534, 7
    %vm2582 = vcmask 1041409
    %v2583 = vsel %vm2582, %v2581, %v2533
    %v2584 = vrot.slane %v2535, 6
    %vm2585 = vcmask 1042434
    %v2586 = vsel %vm2585, %v2584, %v2583
    %v2587 = vrot.slane %v2536, 5
    %vm2588 = vcmask 1043459
    %v2589 = vsel %vm2588, %v2587, %v2586
    %v2590 = vrot.slane %v2537, 4
    %vm2591 = vcmask 1044484
    %v2592 = vsel %vm2591, %v2590, %v2589
    %v2593 = vrot.slane %v2538, 3
    %vm2594 = vcmask 1045509
    %v2595 = vsel %vm2594, %v2593, %v2592
    %v2596 = vrot.slane %v2539, 2
    %vm2597 = vcmask 1046534
    %v2598 = vsel %vm2597, %v2596, %v2595
    %v2599 = vrot.slane %v2540, 1
    %vm2600 = vcmask 1047559
    %v2601 = vsel %vm2600, %v2599, %v2598
    %v2602 = vrot.slane %v2542, 7
    %v2603 = vsel %vm2582, %v2602, %v2541
    %v2604 = vrot.slane %v2543, 6
    %v2605 = vsel %vm2585, %v2604, %v2603
    %v2606 = vrot.slane %v2544, 5
    %v2607 = vsel %vm2588, %v2606, %v2605
    %v2608 = vrot.slane %v2545, 4
    %v2609 = vsel %vm2591, %v2608, %v2607
    %v2610 = vrot.slane %v2546, 3
    %v2611 = vsel %vm2594, %v2610, %v2609
    %v2612 = vrot.slane %v2547, 2
    %v2613 = vsel %vm2597, %v2612, %v2611
    %v2614 = vrot.slane %v2548, 1
    %v2615 = vsel %vm2600, %v2614, %v2613
    %v2634 = vrot.slane %v2550, 7
    %v2635 = vsel %vm2582, %v2634, %v2549
    %v2636 = vrot.slane %v2551, 6
    %v2637 = vsel %vm2585, %v2636, %v2635
    %v2638 = vrot.slane %v2552, 5
    %v2639 = vsel %vm2588, %v2638, %v2637
    %v2640 = vrot.slane %v2553, 4
    %v2641 = vsel %vm2591, %v2640, %v2639
    %v2642 = vrot.slane %v2554, 3
    %v2643 = vsel %vm2594, %v2642, %v2641
    %v2644 = vrot.slane %v2555, 2
    %v2645 = vsel %vm2597, %v2644, %v2643
    %v2646 = vrot.slane %v2556, 1
    %v2647 = vsel %vm2600, %v2646, %v2645
    %v2648 = vrot.slane %v2558, 7
    %v2649 = vsel %vm2582, %v2648, %v2557
    %v2650 = vrot.slane %v2559, 6
    %v2651 = vsel %vm2585, %v2650, %v2649
    %v2652 = vrot.slane %v2560, 5
    %v2653 = vsel %vm2588, %v2652, %v2651
    %v2654 = vrot.slane %v2561, 4
    %v2655 = vsel %vm2591, %v2654, %v2653
    %v2656 = vrot.slane %v2562, 3
    %v2657 = vsel %vm2594, %v2656, %v2655
    %v2658 = vrot.slane %v2563, 2
    %v2659 = vsel %vm2597, %v2658, %v2657
    %v2660 = vrot.slane %v2564, 1
    %v2661 = vsel %vm2600, %v2660, %v2659
    %2662 = vrot.lane.b32.xlu0 %v2647, 64
    %v2663 = vpop.permute.xlu0 %2662
    %2664 = vrot.lane.b32.xlu0 %v2661, 64
    %v2665 = vpop.permute.xlu0 %2664
    %v2668 = vld [vmem:[#allocation2] sm:$0xff]
    %v2669 = vld [vmem:[#allocation2 + $0x8] sm:$0xff]
    %v2670 = vld [vmem:[#allocation2 + $0x10] sm:$0xff]
    %v2671 = vld [vmem:[#allocation2 + $0x18] sm:$0xff]
    %2676 = vrot.lane.b32.xlu0 %v108, 64
    %v2677 = vpop.permute.xlu0 %2676
    %2678 = vrot.lane.b32.xlu0 %v111, 64
    %v2679 = vpop.permute.xlu0 %2678
    %2680 = vrot.lane.b32.xlu0 %v114, 64
    %v2681 = vpop.permute.xlu0 %2680
    %2682 = vrot.lane.b32.xlu0 %v117, 64
    %v2683 = vpop.permute.xlu0 %2682
    %v2689 = vsel %vm123, %v2668, 0
    %v2692 = vsel %vm123, %v2669, 0
    %v2695 = vsel %vm123, %v2670, 0
    %v2698 = vsel %vm123, %v2671, 0
    %2700 = vmatpush.msra.mxu0 0.0
    %2701 = vmatpush.msra.mxu0 0.0
    %2702 = vmatpush.msra.mxu0 0.0
    %2703 = vmatpush.msra.mxu0 0.0
    %2704 = vmatpush.msra.mxu0 0.0
    %2705 = vmatpush.msra.mxu0 0.0
    %2706 = vmatpush.msra.mxu0 0.0
    %2707 = vmatpush.msra.mxu0 0.0
    %2708 = vmatpush.msra.mxu0 0.0
    %2709 = vmatpush.msra.mxu0 0.0
    %2710 = vmatpush.msra.mxu0 0.0
    %2711 = vmatpush.msra.mxu0 0.0
    %2712 = vmatpush.msra.mxu0 %v2665
    %2713 = vmatpush.msra.mxu0 %v2663
    %2714 = vmatpush.msra.mxu0 %v2615
    %2715 = vmatpush.msra.mxu0 %v2601
    %2716 = vmatmul.f32.gmra.mxu0 %v2689
    %v2717 = vpop.f32.mrf.mxu0
    %v2718 = vadd.f32 %v2677, %v2717
    %2719 = vmatmul.f32.gmra.mxu0 %v2692
    %v2720 = vpop.f32.mrf.mxu0
    %v2721 = vadd.f32 %v2679, %v2720
    %2722 = vmatmul.f32.gmra.mxu0 %v2695
    %v2723 = vpop.f32.mrf.mxu0
    %v2724 = vadd.f32 %v2681, %v2723
    %2725 = vmatmul.f32.gmra.mxu0 %v2698
    %v2726 = vpop.f32.mrf.mxu0
    %v2727 = vadd.f32 %v2683, %v2726
    %2728 = vdwg.mxu0
    %v2729 = vld [vmem:[#allocation4] sm:$0xff]
    %v2730 = vld [vmem:[#allocation4 + $0x8] sm:$0xff]
    %v2731 = vld [vmem:[#allocation4 + $0x10] sm:$0xff]
    %v2732 = vld [vmem:[#allocation4 + $0x18] sm:$0xff]
    %v2733 = vld [vmem:[#allocation4 + $0x20] sm:$0xff]
    %v2734 = vld [vmem:[#allocation4 + $0x28] sm:$0xff]
    %v2735 = vld [vmem:[#allocation4 + $0x30] sm:$0xff]
    %v2736 = vld [vmem:[#allocation4 + $0x38] sm:$0xff]
    %v2737 = vld [vmem:[%s7] sm:$0x1]
    %v2739 = vperm.slane %v2737, 0
    %v2742 = vsel %vm77, %v2718, 0
    %v2745 = vsel %vm77, %v2721, 0
    %v2748 = vsel %vm77, %v2724, 0
    %v2751 = vsel %vm77, %v2727, 0
    %2753 = vmatpush.msra.mxu0 0.0
    %2754 = vmatpush.msra.mxu0 0.0
    %2755 = vmatpush.msra.mxu0 0.0
    %2756 = vmatpush.msra.mxu0 0.0
    %2757 = vmatpush.msra.mxu0 0.0
    %2758 = vmatpush.msra.mxu0 0.0
    %2759 = vmatpush.msra.mxu0 0.0
    %2760 = vmatpush.msra.mxu0 0.0
    %2761 = vmatpush.msra.mxu0 %v2736
    %2762 = vmatpush.msra.mxu0 %v2735
    %2763 = vmatpush.msra.mxu0 %v2734
    %2764 = vmatpush.msra.mxu0 %v2733
    %2765 = vmatpush.msra.mxu0 %v2732
    %2766 = vmatpush.msra.mxu0 %v2731
    %2767 = vmatpush.msra.mxu0 %v2730
    %2768 = vmatpush.msra.mxu0 %v2729
    %2769 = vmatmul.f32.gmra.mxu0 %v2742
    %v2770 = vpop.f32.mrf.mxu0
    %v2771 = vadd.f32 %v2739, %v2770
    %2772 = vmatmul.f32.gmra.mxu0 %v2745
    %v2773 = vpop.f32.mrf.mxu0
    %v2774 = vadd.f32 %v2739, %v2773
    %2775 = vmatmul.f32.gmra.mxu0 %v2748
    %v2776 = vpop.f32.mrf.mxu0
    %v2777 = vadd.f32 %v2739, %v2776
    %2778 = vmatmul.f32.gmra.mxu0 %v2751
    %v2779 = vpop.f32.mrf.mxu0
    %v2780 = vadd.f32 %v2739, %v2779
    %2781 = vdwg.mxu0
    %2782 = vst.msk [vmem:[%s8] sm:$0xff] %vm77, %v2771
    %2783 = vst.msk [vmem:[%s8 + $0x8] sm:$0xff] %vm77, %v2774
    %2784 = vst.msk [vmem:[%s8 + $0x10] sm:$0xff] %vm77, %v2777
    %2785 = vst.msk [vmem:[%s8 + $0x18] sm:$0xff] %vm77, %v2780
    // Predicated region
    $region42: #{_febw_forward.1} parent=1 // pred_check
      _
    $region43: #{_febw_forward.1} parent=1 // pred_check_branch
      %2787 = sbr.rel (0) target = $region45
    $region44: #{_febw_forward.1} parent=1 // pred_region
      _
    $region45: #{_febw_forward.1} parent=1 // pred_fallthru
      _
    // Predicated region
    $region46: #{_febw_forward.1} parent=1 // pred_check
      _
    $region47: #{_febw_forward.1} parent=1 // pred_check_branch
      %2789 = sbr.rel (0) target = $region49
    $region48: #{_febw_forward.1} parent=1 // pred_region
      _
    $region49: #{_febw_forward.1} parent=1 // pred_fallthru
      _
    %2790 = vsyncpa [#allocation3], 1
    %2791 = vsyncpa [#allocation5], 1

</llo_original>
